<compile_context>
chip_gen: v7x
topology: tpu7x:2x2x1
jax: 0.10.0
libtpu: 0.0.40
codegen_flags: <defaults>
</compile_context>

<pallas_src>
import functools

import jax
import jax.numpy as jnp
from jax.experimental import pallas as pl
from jax.experimental.pallas import tpu as pltpu


# ---------------------------------------------------------------------------
# helpers
# ---------------------------------------------------------------------------
def _round_up(n, m):
    return ((n + m - 1) // m) * m


def _pad_to(x, shape, value=0.0):
    pads = [(0, s - d) for d, s in zip(x.shape, shape)]
    return jnp.pad(x, pads, constant_values=value)


def _vmem_limit_bytes():
    # Generation-aware scoped-VMEM cap (~65% of physical capacity), safe fallback.
    try:
        cap = int(pltpu.get_tpu_info().vmem_capacity_bytes)
        return max(32 * 1024 * 1024, min(int(cap * 0.65), 100 * 1024 * 1024))
    except Exception:
        return 48 * 1024 * 1024


VMEM_LIMIT_BYTES = _vmem_limit_bytes()


# ---------------------------------------------------------------------------
# Kernel 1: fused input projection + tb-step tanh recurrence per time block
# ---------------------------------------------------------------------------
def rnn_block_kernel(x_ref, w_ih_ref, w_hh_ref, b_ref, h_out_ref, h_ref, xp_ref,
                     *, seq, tb):
    blk = pl.program_id(0)

    @pl.when(blk == 0)
    def _():
        h_ref[...] = jnp.zeros(h_ref.shape, jnp.float32)

    tb_blk, bp, ep = x_ref.shape
    hp = w_ih_ref.shape[1]

    # Fused Phase A: X_proj = x @ W_ih^T + (b_ih + b_hh), one MXU matmul per block.
    # Reshape is layout-preserving because bp % 16 == 0 (bf16 sublane tile).
    x2d = x_ref[...].reshape(tb_blk * bp, ep)                  # bf16
    xp = jnp.dot(x2d, w_ih_ref[...], preferred_element_type=jnp.float32)
    xp = xp + b_ref[...]                                       # (1, hp) broadcast add
    xp_ref[...] = xp.reshape(tb_blk, bp, hp)

    # Phase B: recurrence with h carried as a loop value (no per-step ref round-trips,
    # no per-step grid/pipeline overhead).
    w_hh = w_hh_ref[...]                                       # resident bf16 (hp, hp)

    def step(i, h):
        h_new = jnp.tanh(
            xp_ref[i]
            + jnp.dot(h.astype(jnp.bfloat16), w_hh, preferred_element_type=jnp.float32)
        )
        # Skip zero-padded timesteps past the true sequence length.
        return jnp.where(blk * tb + i < seq, h_new, h)

    h = jax.lax.fori_loop(0, tb, step, h_ref[...], unroll=True)
    h_ref[...] = h

    @pl.when(blk == pl.num_programs(0) - 1)
    def _():
        h_out_ref[...] = h


# ---------------------------------------------------------------------------
# Kernel 2: Phase C pass 1 — logsumexp over vocab tiles (online max / sum)
# ---------------------------------------------------------------------------
def lse_kernel(h_ref, w_out_ref, b_out_ref, lse_ref, m_ref, l_ref):
    j = pl.program_id(0)

    @pl.when(j == 0)
    def _():
        m_ref[...] = jnp.full(m_ref.shape, -jnp.inf, jnp.float32)
        l_ref[...] = jnp.zeros(l_ref.shape, jnp.float32)

    logits = (
        jnp.dot(h_ref[...], w_out_ref[...], preferred_element_type=jnp.float32)
        + b_out_ref[...]
    )  # (bp, tile_v); padded vocab columns sit at ~-1e30 -> exp() == 0

    m_old = m_ref[...]
    m_new = jnp.maximum(m_old, jnp.max(logits, axis=-1, keepdims=True))
    l_ref[...] = l_ref[...] * jnp.exp(m_old - m_new) + jnp.sum(
        jnp.exp(logits - m_new), axis=-1, keepdims=True
    )
    m_ref[...] = m_new

    @pl.when(j == pl.num_programs(0) - 1)
    def _():
        lse_ref[...] = m_ref[...] + jnp.log(l_ref[...])


# ---------------------------------------------------------------------------
# Kernel 3: Phase C pass 2 — per-vocab-tile logits - lse (parallel, lane-dense out)
# ---------------------------------------------------------------------------
def logits_out_kernel(h_ref, w_out_ref, b_out_ref, lse_ref, out_ref):
    logits = (
        jnp.dot(h_ref[...], w_out_ref[...], preferred_element_type=jnp.float32)
        + b_out_ref[...]
    )
    out_ref[...] = logits - lse_ref[...]


# ---------------------------------------------------------------------------
# wrapper
# ---------------------------------------------------------------------------
@jax.jit
def rnn_language_model_forward(inp, params):
    emb = params["embedding"]
    w_ih, w_hh = params["w_ih"], params["w_hh"]
    b_ih, b_hh = params["b_ih"], params["b_hh"]
    w_out, b_out = params["w_out"], params["b_out"]

    batch, seq = inp.shape
    vocab, n_embed = emb.shape
    n_hidden = w_hh.shape[0]

    # TPU-aligned padded sizes.  bp padded to 16 keeps bf16 (tb,bp,E)->(tb*bp,E)
    # reshapes layout-preserving (bf16 sublane tile = 16).
    bp = _round_up(batch, 16)
    ep = _round_up(n_embed, 128)
    hp = _round_up(n_hidden, 128)
    tb = min(32, _round_up(seq, 8))            # timesteps fused per grid step
    sp = _round_up(seq, tb)
    tile_v = min(2048, _round_up(vocab, 256))  # larger lane-dense vocab tiles
    vp = _round_up(vocab, tile_v)

    # Embedding gather directly time-major (transpose the tiny index matrix, not the
    # embedded activations); activations stream as bf16.
    # TODO(synk): fuse the embedding gather into the RNN kernel via scalar-prefetch row
    #             indexing to avoid materializing (seq, batch, n_embed) in HBM at all.
    x = jnp.take(emb, inp.T, axis=0).astype(jnp.bfloat16)      # (seq, batch, E)
    x = _pad_to(x, (sp, bp, ep))

    # Pre-transposed, zero-padded bf16 weights (halve HBM traffic, 2x MXU throughput);
    # biases and all accumulations / activations stay f32.
    w_ih_t = _pad_to(w_ih.T, (ep, hp)).astype(jnp.bfloat16)
    w_hh_t = _pad_to(w_hh.T, (hp, hp)).astype(jnp.bfloat16)
    w_out_t = _pad_to(w_out.T, (hp, vp)).astype(jnp.bfloat16)
    b_fused = _pad_to((b_ih + b_hh).astype(jnp.float32), (hp,)).reshape(1, hp)
    b_out_p = _pad_to(b_out.astype(jnp.float32), (vp,), value=-1e30).reshape(1, vp)

    # ---------------- fused input projection + recurrence -------------------
    h_last = pl.pallas_call(
        functools.partial(rnn_block_kernel, seq=seq, tb=tb),
        out_shape=jax.ShapeDtypeStruct((bp, hp), jnp.float32),
        grid=(sp // tb,),
        in_specs=[
            pl.BlockSpec((tb, bp, ep), lambda i: (i, 0, 0)),
            pl.BlockSpec((ep, hp), lambda i: (0, 0)),
            pl.BlockSpec((hp, hp), lambda i: (0, 0)),
            pl.BlockSpec((1, hp), lambda i: (0, 0)),
        ],
        out_specs=pl.BlockSpec((bp, hp), lambda i: (0, 0)),
        scratch_shapes=[
            pltpu.VMEM((bp, hp), jnp.float32),      # carried hidden state
            pltpu.VMEM((tb, bp, hp), jnp.float32),  # X_proj for the current block
        ],
        compiler_params=pltpu.CompilerParams(
            dimension_semantics=("arbitrary",),
            vmem_limit_bytes=VMEM_LIMIT_BYTES,
        ),
    )(x, w_ih_t, w_hh_t, b_fused)

    h_b = h_last.astype(jnp.bfloat16)   # bf16 operand for the output projection

    # ---------------- Phase C pass 1: logsumexp ------------------------------
    lse = pl.pallas_call(
        lse_kernel,
        out_shape=jax.ShapeDtypeStruct((bp, 1), jnp.float32),
        grid=(vp // tile_v,),
        in_specs=[
            pl.BlockSpec((bp, hp), lambda j: (0, 0)),
            pl.BlockSpec((hp, tile_v), lambda j: (0, j)),
            pl.BlockSpec((1, tile_v), lambda j: (0, j)),
        ],
        out_specs=pl.BlockSpec((bp, 1), lambda j: (0, 0)),
        scratch_shapes=[
            pltpu.VMEM((bp, 1), jnp.float32),   # running max
            pltpu.VMEM((bp, 1), jnp.float32),   # running sum of exp
        ],
        compiler_params=pltpu.CompilerParams(
            dimension_semantics=("arbitrary",),
            vmem_limit_bytes=VMEM_LIMIT_BYTES,
        ),
    )(h_b, w_out_t, b_out_p)

    # ---------------- Phase C pass 2: logits - lse, vocab-tiled output -------
    out_padded = pl.pallas_call(
        logits_out_kernel,
        out_shape=jax.ShapeDtypeStruct((bp, vp), jnp.float32),
        grid=(vp // tile_v,),
        in_specs=[
            pl.BlockSpec((bp, hp), lambda j: (0, 0)),
            pl.BlockSpec((hp, tile_v), lambda j: (0, j)),
            pl.BlockSpec((1, tile_v), lambda j: (0, j)),
            pl.BlockSpec((bp, 1), lambda j: (0, 0)),
        ],
        out_specs=pl.BlockSpec((bp, tile_v), lambda j: (0, j)),
        compiler_params=pltpu.CompilerParams(
            dimension_semantics=("parallel",),
            vmem_limit_bytes=VMEM_LIMIT_BYTES,
        ),
    )(h_b, w_out_t, b_out_p, lse)

    return out_padded[:batch, :vocab]


# ---------------------------------------------------------------------------
# parameter init + pure-JAX (f32) reference
# ---------------------------------------------------------------------------
def make_params(key, vocab_size, n_embed, n_hidden):
    ks = jax.random.split(key, 7)
    bound = 1.0 / jnp.sqrt(jnp.float32(n_hidden))
    u = lambda k, shape: jax.random.uniform(k, shape, jnp.float32, -bound, bound)
    return {
        "embedding": jax.random.normal(ks[0], (vocab_size, n_embed), jnp.float32),
        "w_ih": u(ks[1], (n_hidden, n_embed)),
        "w_hh": u(ks[2], (n_hidden, n_hidden)),
        "b_ih": u(ks[3], (n_hidden,)),
        "b_hh": u(ks[4], (n_hidden,)),
        "w_out": u(ks[5], (vocab_size, n_hidden)),
        "b_out": u(ks[6], (vocab_size,)),
    }


def reference_forward(inp, params):
    x = jnp.take(params["embedding"], inp, axis=0).astype(jnp.float32)
    x = jnp.transpose(x, (1, 0, 2))                         # (seq, batch, n_embed)
    seq, batch, _ = x.shape
    h = jnp.zeros((batch, params["w_hh"].shape[0]), jnp.float32)
    for t in range(seq):
        h = jnp.tanh(x[t] @ params["w_ih"].T + params["b_ih"]
                     + h @ params["w_hh"].T + params["b_hh"])
    logits = h @ params["w_out"].T + params["b_out"]
    return jax.nn.log_softmax(logits, axis=-1)


if __name__ == "__main__":
    vocab_size, n_embed, n_hidden = 64, 32, 32
    batch, seq = 2, 3   # matches the "batch x 3" docstring

    key = jax.random.PRNGKey(0)
    pkey, ikey = jax.random.split(key)
    params = make_params(pkey, vocab_size, n_embed, n_hidden)
    inp = jax.random.randint(ikey, (batch, seq), 0, vocab_size, dtype=jnp.int32)

    out = rnn_language_model_forward(inp, params)
    out = jax.block_until_ready(out)

    ref = reference_forward(inp, params)
    assert out.shape == (batch, vocab_size)
    # bf16 weights vs. f32 reference -> slightly looser tolerance.
    assert jnp.allclose(out, ref, atol=2e-2, rtol=2e-2), "mismatch vs JAX reference"

    print("KERNEL_OK")
</pallas_src>

<mosaic_0001>
module attributes {stable_mosaic.version = 11 : i64} {
  func.func @logits_out_kernel(%arg0: i32, %arg1: memref<16x128xbf16, #tpu.memory_space<vmem>>, %arg2: memref<128x256xbf16, #tpu.memory_space<vmem>>, %arg3: memref<1x256xf32, #tpu.memory_space<vmem>>, %arg4: memref<16x1xf32, #tpu.memory_space<vmem>>, %arg5: memref<16x256xf32, #tpu.memory_space<vmem>>) attributes {dimension_semantics = [#tpu.dimension_semantics<parallel>], iteration_bounds = array<i64: 1>, scalar_prefetch = 0 : i64, scratch_operands = 0 : i64, tpu.core_type = #tpu.core_type<tc>, window_params = [{pipeline_mode = #tpu.pipeline_mode<synchronous>, transform_indices = @transform_0, window_bounds = array<i64: 16, 128>}, {transform_indices = @transform_1, window_bounds = array<i64: 128, 256>}, {transform_indices = @transform_2, window_bounds = array<i64: 1, 256>}, {pipeline_mode = #tpu.pipeline_mode<synchronous>, transform_indices = @transform_3, window_bounds = array<i64: 16, 1>}, {transform_indices = @transform_4, window_bounds = array<i64: 16, 256>}]} {
    %c0 = arith.constant 0 : index
    %c0_0 = arith.constant 0 : index
    %0 = vector.load %arg1[%c0, %c0_0] : memref<16x128xbf16, #tpu.memory_space<vmem>>, vector<16x128xbf16>
    %c0_1 = arith.constant 0 : index
    %c0_2 = arith.constant 0 : index
    %1 = vector.load %arg2[%c0_1, %c0_2] : memref<128x256xbf16, #tpu.memory_space<vmem>>, vector<128x256xbf16>
    %cst = arith.constant dense<0.000000e+00> : vector<16x256xf32>
    %2 = tpu.matmul %0, %1, %cst {dimension_numbers = #tpu.dot_dimension_numbers<[1], [0], [0], [1], [0, 0, 1, 1], [], []>} : vector<16x128xbf16>, vector<128x256xbf16>, vector<16x256xf32> -> vector<16x256xf32>
    %c0_3 = arith.constant 0 : index
    %c0_4 = arith.constant 0 : index
    %3 = vector.load %arg3[%c0_3, %c0_4] : memref<1x256xf32, #tpu.memory_space<vmem>>, vector<1x256xf32>
    %4 = vector.broadcast %3 : vector<1x256xf32> to vector<16x256xf32>
    %5 = arith.addf %2, %4 : vector<16x256xf32>
    %c0_5 = arith.constant 0 : index
    %c0_6 = arith.constant 0 : index
    %6 = vector.load %arg4[%c0_5, %c0_6] : memref<16x1xf32, #tpu.memory_space<vmem>>, vector<16x1xf32>
    %7 = vector.broadcast %6 : vector<16x1xf32> to vector<16x256xf32>
    %8 = arith.subf %5, %7 : vector<16x256xf32>
    %c0_7 = arith.constant 0 : index
    %c0_8 = arith.constant 0 : index
    %9 = vector.load %arg5[%c0_7, %c0_8] : memref<16x256xf32, #tpu.memory_space<vmem>>, vector<16x256xf32>
    tpu.vector_store %arg5[%c0_7, %c0_8], %8 {strides = array<i32>} : memref<16x256xf32, #tpu.memory_space<vmem>>, vector<16x256xf32>,
    return
  }
  func.func @transform_0(%arg0: i32) -> (i32, i32) {
    %c0_i32 = arith.constant 0 : i32
    %c0_i32_0 = arith.constant 0 : i32
    %c0_i32_1 = arith.constant 0 : i32
    return %c0_i32, %c0_i32_0 : i32, i32
  }
  func.func @transform_1(%arg0: i32) -> (i32, i32) {
    %c0_i32 = arith.constant 0 : i32
    %c0_i32_0 = arith.constant 0 : i32
    return %c0_i32, %arg0 : i32, i32
  }
  func.func @transform_2(%arg0: i32) -> (i32, i32) {
    %c0_i32 = arith.constant 0 : i32
    %c0_i32_0 = arith.constant 0 : i32
    return %c0_i32, %arg0 : i32, i32
  }
  func.func @transform_3(%arg0: i32) -> (i32, i32) {
    %c0_i32 = arith.constant 0 : i32
    %c0_i32_0 = arith.constant 0 : i32
    %c0_i32_1 = arith.constant 0 : i32
    return %c0_i32, %c0_i32_0 : i32, i32
  }
  func.func @transform_4(%arg0: i32) -> (i32, i32) {
    %c0_i32 = arith.constant 0 : i32
    %c0_i32_0 = arith.constant 0 : i32
    return %c0_i32, %arg0 : i32, i32
  }
}

module attributes {stable_mosaic.version = 11 : i64} {
  func.func @rnn_block_kernel(%arg0: i32, %arg1: memref<8x16x128xbf16, #tpu.memory_space<vmem>>, %arg2: memref<128x128xbf16, #tpu.memory_space<vmem>>, %arg3: memref<128x128xbf16, #tpu.memory_space<vmem>>, %arg4: memref<1x128xf32, #tpu.memory_space<vmem>>, %arg5: memref<16x128xf32, #tpu.memory_space<vmem>>, %arg6: memref<16x128xf32, #tpu.memory_space<vmem>>, %arg7: memref<8x16x128xf32, #tpu.memory_space<vmem>>) attributes {dimension_semantics = [#tpu.dimension_semantics<arbitrary>], iteration_bounds = array<i64: 1>, scalar_prefetch = 0 : i64, scratch_operands = 2 : i64, tpu.core_type = #tpu.core_type<tc>, window_params = [{transform_indices = @transform_0, window_bounds = array<i64: 8, 16, 128>}, {pipeline_mode = #tpu.pipeline_mode<synchronous>, transform_indices = @transform_1, window_bounds = array<i64: 128, 128>}, {pipeline_mode = #tpu.pipeline_mode<synchronous>, transform_indices = @transform_2, window_bounds = array<i64: 128, 128>}, {pipeline_mode = #tpu.pipeline_mode<synchronous>, transform_indices = @transform_3, window_bounds = array<i64: 1, 128>}, {pipeline_mode = #tpu.pipeline_mode<synchronous>, transform_indices = @transform_4, window_bounds = array<i64: 16, 128>}]} {
    %c0_i32 = arith.constant 0 : i32
    %0 = arith.cmpi eq, %arg0, %c0_i32 : i32
    %1 = arith.extui %0 : i1 to i32
    %c0_i32_0 = arith.constant 0 : i32
    %2 = arith.cmpi ne, %1, %c0_i32_0 : i32
    scf.if %2 {
      %cst_59 = arith.constant 0.000000e+00 : f32
      %106 = vector.broadcast %cst_59 : f32 to vector<16x128xf32>
      %c0_60 = arith.constant 0 : index
      %c0_61 = arith.constant 0 : index
      %107 = vector.load %arg6[%c0_60, %c0_61] : memref<16x128xf32, #tpu.memory_space<vmem>>, vector<16x128xf32>
      tpu.vector_store %arg6[%c0_60, %c0_61], %106 {strides = array<i32>} : memref<16x128xf32, #tpu.memory_space<vmem>>, vector<16x128xf32>,
    } else {
    }
    %c0 = arith.constant 0 : index
    %c0_1 = arith.constant 0 : index
    %c0_2 = arith.constant 0 : index
    %3 = vector.load %arg1[%c0, %c0_1, %c0_2] : memref<8x16x128xbf16, #tpu.memory_space<vmem>>, vector<8x16x128xbf16>
    %4 = vector.shape_cast %3 : vector<8x16x128xbf16> to vector<128x128xbf16>
    %c0_3 = arith.constant 0 : index
    %c0_4 = arith.constant 0 : index
    %5 = vector.load %arg2[%c0_3, %c0_4] : memref<128x128xbf16, #tpu.memory_space<vmem>>, vector<128x128xbf16>
    %cst = arith.constant dense<0.000000e+00> : vector<128x128xf32>
    %6 = tpu.matmul %4, %5, %cst {dimension_numbers = #tpu.dot_dimension_numbers<[1], [0], [0], [1], [0, 0, 1, 1], [], []>} : vector<128x128xbf16>, vector<128x128xbf16>, vector<128x128xf32> -> vector<128x128xf32>
    %c0_5 = arith.constant 0 : index
    %c0_6 = arith.constant 0 : index
    %7 = vector.load %arg4[%c0_5, %c0_6] : memref<1x128xf32, #tpu.memory_space<vmem>>, vector<1x128xf32>
    %8 = vector.broadcast %7 : vector<1x128xf32> to vector<128x128xf32>
    %9 = arith.addf %6, %8 : vector<128x128xf32>
    %10 = vector.shape_cast %9 : vector<128x128xf32> to vector<8x16x128xf32>
    %c0_7 = arith.constant 0 : index
    %c0_8 = arith.constant 0 : index
    %c0_9 = arith.constant 0 : index
    %11 = vector.load %arg7[%c0_7, %c0_8, %c0_9] : memref<8x16x128xf32, #tpu.memory_space<vmem>>, vector<8x16x128xf32>
    tpu.vector_store %arg7[%c0_7, %c0_8, %c0_9], %10 {strides = array<i32>} : memref<8x16x128xf32, #tpu.memory_space<vmem>>, vector<8x16x128xf32>,
    %c0_10 = arith.constant 0 : index
    %c0_11 = arith.constant 0 : index
    %12 = vector.load %arg3[%c0_10, %c0_11] : memref<128x128xbf16, #tpu.memory_space<vmem>>, vector<128x128xbf16>
    %c0_12 = arith.constant 0 : index
    %c0_13 = arith.constant 0 : index
    %13 = vector.load %arg6[%c0_12, %c0_13] : memref<16x128xf32, #tpu.memory_space<vmem>>, vector<16x128xf32>
    %c0_i32_14 = arith.constant 0 : i32
    %14 = arith.index_cast %c0_i32_14 : i32 to index
    %c0_15 = arith.constant 0 : index
    %c0_16 = arith.constant 0 : index
    %15 = vector.load %arg7[%14, %c0_15, %c0_16] : memref<8x16x128xf32, #tpu.memory_space<vmem>>, vector<1x16x128xf32>
    %16 = vector.shape_cast %15 : vector<1x16x128xf32> to vector<16x128xf32>
    %17 = arith.truncf %13 : vector<16x128xf32> to vector<16x128xbf16>
    %cst_17 = arith.constant dense<0.000000e+00> : vector<16x128xf32>
    %18 = tpu.matmul %17, %12, %cst_17 {dimension_numbers = #tpu.dot_dimension_numbers<[1], [0], [0], [1], [0, 0, 1, 1], [], []>} : vector<16x128xbf16>, vector<128x128xbf16>, vector<16x128xf32> -> vector<16x128xf32>
    %19 = arith.addf %16, %18 : vector<16x128xf32>
    %20 = math.tanh %19 : vector<16x128xf32>
    %c8_i32 = arith.constant 8 : i32
    %21 = arith.muli %arg0, %c8_i32 : i32
    %22 = arith.addi %21, %c0_i32_14 : i32
    %c3_i32 = arith.constant 3 : i32
    %23 = arith.cmpi slt, %22, %c3_i32 : i32
    %24 = arith.select %23, %20, %13 : vector<16x128xf32>
    %c1_i32 = arith.constant 1 : i32
    %25 = arith.index_cast %c1_i32 : i32 to index
    %c0_18 = arith.constant 0 : index
    %c0_19 = arith.constant 0 : index
    %26 = vector.load %arg7[%25, %c0_18, %c0_19] : memref<8x16x128xf32, #tpu.memory_space<vmem>>, vector<1x16x128xf32>
    %27 = vector.shape_cast %26 : vector<1x16x128xf32> to vector<16x128xf32>
    %28 = arith.truncf %24 : vector<16x128xf32> to vector<16x128xbf16>
    %cst_20 = arith.constant dense<0.000000e+00> : vector<16x128xf32>
    %29 = tpu.matmul %28, %12, %cst_20 {dimension_numbers = #tpu.dot_dimension_numbers<[1], [0], [0], [1], [0, 0, 1, 1], [], []>} : vector<16x128xbf16>, vector<128x128xbf16>, vector<16x128xf32> -> vector<16x128xf32>
    %30 = arith.addf %27, %29 : vector<16x128xf32>
    %31 = math.tanh %30 : vector<16x128xf32>
    %c8_i32_21 = arith.constant 8 : i32
    %32 = arith.muli %arg0, %c8_i32_21 : i32
    %33 = arith.addi %32, %c1_i32 : i32
    %c3_i32_22 = arith.constant 3 : i32
    %34 = arith.cmpi slt, %33, %c3_i32_22 : i32
    %35 = arith.select %34, %31, %24 : vector<16x128xf32>
    %c2_i32 = arith.constant 2 : i32
    %36 = arith.index_cast %c2_i32 : i32 to index
    %c0_23 = arith.constant 0 : index
    %c0_24 = arith.constant 0 : index
    %37 = vector.load %arg7[%36, %c0_23, %c0_24] : memref<8x16x128xf32, #tpu.memory_space<vmem>>, vector<1x16x128xf32>
    %38 = vector.shape_cast %37 : vector<1x16x128xf32> to vector<16x128xf32>
    %39 = arith.truncf %35 : vector<16x128xf32> to vector<16x128xbf16>
    %cst_25 = arith.constant dense<0.000000e+00> : vector<16x128xf32>
    %40 = tpu.matmul %39, %12, %cst_25 {dimension_numbers = #tpu.dot_dimension_numbers<[1], [0], [0], [1], [0, 0, 1, 1], [], []>} : vector<16x128xbf16>, vector<128x128xbf16>, vector<16x128xf32> -> vector<16x128xf32>
    %41 = arith.addf %38, %40 : vector<16x128xf32>
    %42 = math.tanh %41 : vector<16x128xf32>
    %c8_i32_26 = arith.constant 8 : i32
    %43 = arith.muli %arg0, %c8_i32_26 : i32
    %44 = arith.addi %43, %c2_i32 : i32
    %c3_i32_27 = arith.constant 3 : i32
    %45 = arith.cmpi slt, %44, %c3_i32_27 : i32
    %46 = arith.select %45, %42, %35 : vector<16x128xf32>
    %c3_i32_28 = arith.constant 3 : i32
    %47 = arith.index_cast %c3_i32_28 : i32 to index
    %c0_29 = arith.constant 0 : index
    %c0_30 = arith.constant 0 : index
    %48 = vector.load %arg7[%47, %c0_29, %c0_30] : memref<8x16x128xf32, #tpu.memory_space<vmem>>, vector<1x16x128xf32>
    %49 = vector.shape_cast %48 : vector<1x16x128xf32> to vector<16x128xf32>
    %50 = arith.truncf %46 : vector<16x128xf32> to vector<16x128xbf16>
    %cst_31 = arith.constant dense<0.000000e+00> : vector<16x128xf32>
    %51 = tpu.matmul %50, %12, %cst_31 {dimension_numbers = #tpu.dot_dimension_numbers<[1], [0], [0], [1], [0, 0, 1, 1], [], []>} : vector<16x128xbf16>, vector<128x128xbf16>, vector<16x128xf32> -> vector<16x128xf32>
    %52 = arith.addf %49, %51 : vector<16x128xf32>
    %53 = math.tanh %52 : vector<16x128xf32>
    %c8_i32_32 = arith.constant 8 : i32
    %54 = arith.muli %arg0, %c8_i32_32 : i32
    %55 = arith.addi %54, %c3_i32_28 : i32
    %c3_i32_33 = arith.constant 3 : i32
    %56 = arith.cmpi slt, %55, %c3_i32_33 : i32
    %57 = arith.select %56, %53, %46 : vector<16x128xf32>
    %c4_i32 = arith.constant 4 : i32
    %58 = arith.index_cast %c4_i32 : i32 to index
    %c0_34 = arith.constant 0 : index
    %c0_35 = arith.constant 0 : index
    %59 = vector.load %arg7[%58, %c0_34, %c0_35] : memref<8x16x128xf32, #tpu.memory_space<vmem>>, vector<1x16x128xf32>
    %60 = vector.shape_cast %59 : vector<1x16x128xf32> to vector<16x128xf32>
    %61 = arith.truncf %57 : vector<16x128xf32> to vector<16x128xbf16>
    %cst_36 = arith.constant dense<0.000000e+00> : vector<16x128xf32>
    %62 = tpu.matmul %61, %12, %cst_36 {dimension_numbers = #tpu.dot_dimension_numbers<[1], [0], [0], [1], [0, 0, 1, 1], [], []>} : vector<16x128xbf16>, vector<128x128xbf16>, vector<16x128xf32> -> vector<16x128xf32>
    %63 = arith.addf %60, %62 : vector<16x128xf32>
    %64 = math.tanh %63 : vector<16x128xf32>
    %c8_i32_37 = arith.constant 8 : i32
    %65 = arith.muli %arg0, %c8_i32_37 : i32
    %66 = arith.addi %65, %c4_i32 : i32
    %c3_i32_38 = arith.constant 3 : i32
    %67 = arith.cmpi slt, %66, %c3_i32_38 : i32
    %68 = arith.select %67, %64, %57 : vector<16x128xf32>
    %c5_i32 = arith.constant 5 : i32
    %69 = arith.index_cast %c5_i32 : i32 to index
    %c0_39 = arith.constant 0 : index
    %c0_40 = arith.constant 0 : index
    %70 = vector.load %arg7[%69, %c0_39, %c0_40] : memref<8x16x128xf32, #tpu.memory_space<vmem>>, vector<1x16x128xf32>
    %71 = vector.shape_cast %70 : vector<1x16x128xf32> to vector<16x128xf32>
    %72 = arith.truncf %68 : vector<16x128xf32> to vector<16x128xbf16>
    %cst_41 = arith.constant dense<0.000000e+00> : vector<16x128xf32>
    %73 = tpu.matmul %72, %12, %cst_41 {dimension_numbers = #tpu.dot_dimension_numbers<[1], [0], [0], [1], [0, 0, 1, 1], [], []>} : vector<16x128xbf16>, vector<128x128xbf16>, vector<16x128xf32> -> vector<16x128xf32>
    %74 = arith.addf %71, %73 : vector<16x128xf32>
    %75 = math.tanh %74 : vector<16x128xf32>
    %c8_i32_42 = arith.constant 8 : i32
    %76 = arith.muli %arg0, %c8_i32_42 : i32
    %77 = arith.addi %76, %c5_i32 : i32
    %c3_i32_43 = arith.constant 3 : i32
    %78 = arith.cmpi slt, %77, %c3_i32_43 : i32
    %79 = arith.select %78, %75, %68 : vector<16x128xf32>
    %c6_i32 = arith.constant 6 : i32
    %80 = arith.index_cast %c6_i32 : i32 to index
    %c0_44 = arith.constant 0 : index
    %c0_45 = arith.constant 0 : index
    %81 = vector.load %arg7[%80, %c0_44, %c0_45] : memref<8x16x128xf32, #tpu.memory_space<vmem>>, vector<1x16x128xf32>
    %82 = vector.shape_cast %81 : vector<1x16x128xf32> to vector<16x128xf32>
    %83 = arith.truncf %79 : vector<16x128xf32> to vector<16x128xbf16>
    %cst_46 = arith.constant dense<0.000000e+00> : vector<16x128xf32>
    %84 = tpu.matmul %83, %12, %cst_46 {dimension_numbers = #tpu.dot_dimension_numbers<[1], [0], [0], [1], [0, 0, 1, 1], [], []>} : vector<16x128xbf16>, vector<128x128xbf16>, vector<16x128xf32> -> vector<16x128xf32>
    %85 = arith.addf %82, %84 : vector<16x128xf32>
    %86 = math.tanh %85 : vector<16x128xf32>
    %c8_i32_47 = arith.constant 8 : i32
    %87 = arith.muli %arg0, %c8_i32_47 : i32
    %88 = arith.addi %87, %c6_i32 : i32
    %c3_i32_48 = arith.constant 3 : i32
    %89 = arith.cmpi slt, %88, %c3_i32_48 : i32
    %90 = arith.select %89, %86, %79 : vector<16x128xf32>
    %c7_i32 = arith.constant 7 : i32
    %91 = arith.index_cast %c7_i32 : i32 to index
    %c0_49 = arith.constant 0 : index
    %c0_50 = arith.constant 0 : index
    %92 = vector.load %arg7[%91, %c0_49, %c0_50] : memref<8x16x128xf32, #tpu.memory_space<vmem>>, vector<1x16x128xf32>
    %93 = vector.shape_cast %92 : vector<1x16x128xf32> to vector<16x128xf32>
    %94 = arith.truncf %90 : vector<16x128xf32> to vector<16x128xbf16>
    %cst_51 = arith.constant dense<0.000000e+00> : vector<16x128xf32>
    %95 = tpu.matmul %94, %12, %cst_51 {dimension_numbers = #tpu.dot_dimension_numbers<[1], [0], [0], [1], [0, 0, 1, 1], [], []>} : vector<16x128xbf16>, vector<128x128xbf16>, vector<16x128xf32> -> vector<16x128xf32>
    %96 = arith.addf %93, %95 : vector<16x128xf32>
    %97 = math.tanh %96 : vector<16x128xf32>
    %c8_i32_52 = arith.constant 8 : i32
    %98 = arith.muli %arg0, %c8_i32_52 : i32
    %99 = arith.addi %98, %c7_i32 : i32
    %c3_i32_53 = arith.constant 3 : i32
    %100 = arith.cmpi slt, %99, %c3_i32_53 : i32
    %101 = arith.select %100, %97, %90 : vector<16x128xf32>
    %c8_i32_54 = arith.constant 8 : i32
    %c0_55 = arith.constant 0 : index
    %c0_56 = arith.constant 0 : index
    %102 = vector.load %arg6[%c0_55, %c0_56] : memref<16x128xf32, #tpu.memory_space<vmem>>, vector<16x128xf32>
    tpu.vector_store %arg6[%c0_55, %c0_56], %101 {strides = array<i32>} : memref<16x128xf32, #tpu.memory_space<vmem>>, vector<16x128xf32>,
    %c0_i32_57 = arith.constant 0 : i32
    %103 = arith.cmpi eq, %arg0, %c0_i32_57 : i32
    %104 = arith.extui %103 : i1 to i32
    %c0_i32_58 = arith.constant 0 : i32
    %105 = arith.cmpi ne, %104, %c0_i32_58 : i32
    scf.if %105 {
      %c0_59 = arith.constant 0 : index
      %c0_60 = arith.constant 0 : index
      %106 = vector.load %arg5[%c0_59, %c0_60] : memref<16x128xf32, #tpu.memory_space<vmem>>, vector<16x128xf32>
      tpu.vector_store %arg5[%c0_59, %c0_60], %101 {strides = array<i32>} : memref<16x128xf32, #tpu.memory_space<vmem>>, vector<16x128xf32>,
    } else {
    }
    return
  }
  func.func @transform_0(%arg0: i32) -> (i32, i32, i32) {
    %c0_i32 = arith.constant 0 : i32
    %c0_i32_0 = arith.constant 0 : i32
    %c0_i32_1 = arith.constant 0 : i32
    return %arg0, %c0_i32, %c0_i32_0 : i32, i32, i32
  }
  func.func @transform_1(%arg0: i32) -> (i32, i32) {
    %c0_i32 = arith.constant 0 : i32
    %c0_i32_0 = arith.constant 0 : i32
    %c0_i32_1 = arith.constant 0 : i32
    return %c0_i32, %c0_i32_0 : i32, i32
  }
  func.func @transform_2(%arg0: i32) -> (i32, i32) {
    %c0_i32 = arith.constant 0 : i32
    %c0_i32_0 = arith.constant 0 : i32
    %c0_i32_1 = arith.constant 0 : i32
    return %c0_i32, %c0_i32_0 : i32, i32
  }
  func.func @transform_3(%arg0: i32) -> (i32, i32) {
    %c0_i32 = arith.constant 0 : i32
    %c0_i32_0 = arith.constant 0 : i32
    %c0_i32_1 = arith.constant 0 : i32
    return %c0_i32, %c0_i32_0 : i32, i32
  }
  func.func @transform_4(%arg0: i32) -> (i32, i32) {
    %c0_i32 = arith.constant 0 : i32
    %c0_i32_0 = arith.constant 0 : i32
    %c0_i32_1 = arith.constant 0 : i32
    return %c0_i32, %c0_i32_0 : i32, i32
  }
}

module attributes {stable_mosaic.version = 11 : i64} {
  func.func @lse_kernel(%arg0: i32, %arg1: memref<16x128xbf16, #tpu.memory_space<vmem>>, %arg2: memref<128x256xbf16, #tpu.memory_space<vmem>>, %arg3: memref<1x256xf32, #tpu.memory_space<vmem>>, %arg4: memref<16x1xf32, #tpu.memory_space<vmem>>, %arg5: memref<16x1xf32, #tpu.memory_space<vmem>>, %arg6: memref<16x1xf32, #tpu.memory_space<vmem>>) attributes {dimension_semantics = [#tpu.dimension_semantics<arbitrary>], iteration_bounds = array<i64: 1>, scalar_prefetch = 0 : i64, scratch_operands = 2 : i64, tpu.core_type = #tpu.core_type<tc>, window_params = [{pipeline_mode = #tpu.pipeline_mode<synchronous>, transform_indices = @transform_0, window_bounds = array<i64: 16, 128>}, {transform_indices = @transform_1, window_bounds = array<i64: 128, 256>}, {transform_indices = @transform_2, window_bounds = array<i64: 1, 256>}, {pipeline_mode = #tpu.pipeline_mode<synchronous>, transform_indices = @transform_3, window_bounds = array<i64: 16, 1>}]} {
    %c0_i32 = arith.constant 0 : i32
    %0 = arith.cmpi eq, %arg0, %c0_i32 : i32
    %1 = arith.extui %0 : i1 to i32
    %c0_i32_0 = arith.constant 0 : i32
    %2 = arith.cmpi ne, %1, %c0_i32_0 : i32
    scf.if %2 {
      %cst_18 = arith.constant 0xFF800000 : f32
      %28 = vector.broadcast %cst_18 : f32 to vector<16x1xf32>
      %c0_19 = arith.constant 0 : index
      %c0_20 = arith.constant 0 : index
      %29 = vector.load %arg5[%c0_19, %c0_20] : memref<16x1xf32, #tpu.memory_space<vmem>>, vector<16x1xf32>
      tpu.vector_store %arg5[%c0_19, %c0_20], %28 {strides = array<i32>} : memref<16x1xf32, #tpu.memory_space<vmem>>, vector<16x1xf32>,
      %cst_21 = arith.constant 0.000000e+00 : f32
      %30 = vector.broadcast %cst_21 : f32 to vector<16x1xf32>
      %c0_22 = arith.constant 0 : index
      %c0_23 = arith.constant 0 : index
      %31 = vector.load %arg6[%c0_22, %c0_23] : memref<16x1xf32, #tpu.memory_space<vmem>>, vector<16x1xf32>
      tpu.vector_store %arg6[%c0_22, %c0_23], %30 {strides = array<i32>} : memref<16x1xf32, #tpu.memory_space<vmem>>, vector<16x1xf32>,
    } else {
    }
    %c0 = arith.constant 0 : index
    %c0_1 = arith.constant 0 : index
    %3 = vector.load %arg1[%c0, %c0_1] : memref<16x128xbf16, #tpu.memory_space<vmem>>, vector<16x128xbf16>
    %c0_2 = arith.constant 0 : index
    %c0_3 = arith.constant 0 : index
    %4 = vector.load %arg2[%c0_2, %c0_3] : memref<128x256xbf16, #tpu.memory_space<vmem>>, vector<128x256xbf16>
    %cst = arith.constant dense<0.000000e+00> : vector<16x256xf32>
    %5 = tpu.matmul %3, %4, %cst {dimension_numbers = #tpu.dot_dimension_numbers<[1], [0], [0], [1], [0, 0, 1, 1], [], []>} : vector<16x128xbf16>, vector<128x256xbf16>, vector<16x256xf32> -> vector<16x256xf32>
    %c0_4 = arith.constant 0 : index
    %c0_5 = arith.constant 0 : index
    %6 = vector.load %arg3[%c0_4, %c0_5] : memref<1x256xf32, #tpu.memory_space<vmem>>, vector<1x256xf32>
    %7 = vector.broadcast %6 : vector<1x256xf32> to vector<16x256xf32>
    %8 = arith.addf %5, %7 : vector<16x256xf32>
    %c0_6 = arith.constant 0 : index
    %c0_7 = arith.constant 0 : index
    %9 = vector.load %arg5[%c0_6, %c0_7] : memref<16x1xf32, #tpu.memory_space<vmem>>, vector<16x1xf32>
    %cst_8 = arith.constant dense<0xFF800000> : vector<16xf32>
    %10 = vector.multi_reduction <maximumf>, %8, %cst_8 [1] : vector<16x256xf32> to vector<16xf32>
    %11 = vector.shape_cast %10 : vector<16xf32> to vector<16x1xf32>
    %12 = arith.maximumf %9, %11 : vector<16x1xf32>
    %c0_9 = arith.constant 0 : index
    %c0_10 = arith.constant 0 : index
    %13 = vector.load %arg6[%c0_9, %c0_10] : memref<16x1xf32, #tpu.memory_space<vmem>>, vector<16x1xf32>
    %14 = arith.subf %9, %12 : vector<16x1xf32>
    %15 = math.exp %14 : vector<16x1xf32>
    %16 = arith.mulf %13, %15 : vector<16x1xf32>
    %17 = vector.broadcast %12 : vector<16x1xf32> to vector<16x256xf32>
    %18 = arith.subf %8, %17 : vector<16x256xf32>
    %19 = math.exp %18 : vector<16x256xf32>
    %cst_11 = arith.constant dense<0.000000e+00> : vector<16xf32>
    %20 = vector.multi_reduction <add>, %19, %cst_11 [1] : vector<16x256xf32> to vector<16xf32>
    %21 = vector.shape_cast %20 : vector<16xf32> to vector<16x1xf32>
    %22 = arith.addf %16, %21 : vector<16x1xf32>
    %c0_12 = arith.constant 0 : index
    %c0_13 = arith.constant 0 : index
    %23 = vector.load %arg6[%c0_12, %c0_13] : memref<16x1xf32, #tpu.memory_space<vmem>>, vector<16x1xf32>
    tpu.vector_store %arg6[%c0_12, %c0_13], %22 {strides = array<i32>} : memref<16x1xf32, #tpu.memory_space<vmem>>, vector<16x1xf32>,
    %c0_14 = arith.constant 0 : index
    %c0_15 = arith.constant 0 : index
    %24 = vector.load %arg5[%c0_14, %c0_15] : memref<16x1xf32, #tpu.memory_space<vmem>>, vector<16x1xf32>
    tpu.vector_store %arg5[%c0_14, %c0_15], %12 {strides = array<i32>} : memref<16x1xf32, #tpu.memory_space<vmem>>, vector<16x1xf32>,
    %c0_i32_16 = arith.constant 0 : i32
    %25 = arith.cmpi eq, %arg0, %c0_i32_16 : i32
    %26 = arith.extui %25 : i1 to i32
    %c0_i32_17 = arith.constant 0 : i32
    %27 = arith.cmpi ne, %26, %c0_i32_17 : i32
    scf.if %27 {
      %c0_18 = arith.constant 0 : index
      %c0_19 = arith.constant 0 : index
      %28 = vector.load %arg5[%c0_18, %c0_19] : memref<16x1xf32, #tpu.memory_space<vmem>>, vector<16x1xf32>
      %c0_20 = arith.constant 0 : index
      %c0_21 = arith.constant 0 : index
      %29 = vector.load %arg6[%c0_20, %c0_21] : memref<16x1xf32, #tpu.memory_space<vmem>>, vector<16x1xf32>
      %30 = math.log %29 : vector<16x1xf32>
      %31 = arith.addf %28, %30 : vector<16x1xf32>
      %c0_22 = arith.constant 0 : index
      %c0_23 = arith.constant 0 : index
      %32 = vector.load %arg4[%c0_22, %c0_23] : memref<16x1xf32, #tpu.memory_space<vmem>>, vector<16x1xf32>
      tpu.vector_store %arg4[%c0_22, %c0_23], %31 {strides = array<i32>} : memref<16x1xf32, #tpu.memory_space<vmem>>, vector<16x1xf32>,
    } else {
    }
    return
  }
  func.func @transform_0(%arg0: i32) -> (i32, i32) {
    %c0_i32 = arith.constant 0 : i32
    %c0_i32_0 = arith.constant 0 : i32
    %c0_i32_1 = arith.constant 0 : i32
    return %c0_i32, %c0_i32_0 : i32, i32
  }
  func.func @transform_1(%arg0: i32) -> (i32, i32) {
    %c0_i32 = arith.constant 0 : i32
    %c0_i32_0 = arith.constant 0 : i32
    return %c0_i32, %arg0 : i32, i32
  }
  func.func @transform_2(%arg0: i32) -> (i32, i32) {
    %c0_i32 = arith.constant 0 : i32
    %c0_i32_0 = arith.constant 0 : i32
    return %c0_i32, %arg0 : i32, i32
  }
  func.func @transform_3(%arg0: i32) -> (i32, i32) {
    %c0_i32 = arith.constant 0 : i32
    %c0_i32_0 = arith.constant 0 : i32
    %c0_i32_1 = arith.constant 0 : i32
    return %c0_i32, %c0_i32_0 : i32, i32
  }
}

</mosaic_0001>

<llo_original>
// kernel: rnn_language_model_forward.4
$region0: #{rnn_language_model_forward.4}
  #allocation0 [shape = 'u32[]', space=smem, size = 0x4, offset = 0x4, fixed_abs, tag = 'smem constant byte address 0x4 - core index']
  #allocation1 [shape = 'u32[144,128]{1,0:T(1,128)}', space=vmem, size = 0x12000, scoped, tag = 'internal scratch']
  #allocation2 [shape = 'f32[16,1]{1,0:T(8,128)}', space=vmem, size = 0x2000, scoped, tag = 'scratch operand']
  #allocation3 [shape = 'f32[16,1]{1,0:T(8,128)}', space=vmem, size = 0x2000, scoped, tag = 'scratch operand']
  %s0 = inlined_call_operand.vmem [shape: bf16[16,128], index: 0, kind: input, shape index: {}]
  %s1 = inlined_call_operand.vmem [shape: bf16[128,256], index: 1, kind: input, shape index: {}]
  %s2 = inlined_call_operand.vmem [shape: f32[1,256], index: 2, kind: input, shape index: {}]
  %s3 = inlined_call_operand.vmem [shape: f32[16,1], index: 3, kind: output, shape index: {}]
  %s4 = sld [smem:[#allocation0]]
  $region30: #{rnn_language_model_forward.4} parent=0
    _
  %s6 = ssub.s32 1, %s4
  %s7 = scalar_select 0, %s6, %s4
  // Predicated region
  $region2: #{rnn_language_model_forward.4} parent=0 // pred_check
    _
  $region3: #{rnn_language_model_forward.4} parent=0 // pred_check_branch
    %9 = sbr.rel (0) target = $region5
  $region4: #{rnn_language_model_forward.4} parent=0 // pred_region
    _
  $region5: #{rnn_language_model_forward.4} parent=0 // pred_fallthru
    _
  // Predicated region
  $region6: #{rnn_language_model_forward.4} parent=0 // pred_check
    _
  $region7: #{rnn_language_model_forward.4} parent=0 // pred_check_branch
    %11 = sbr.rel (0) target = $region9
  $region8: #{rnn_language_model_forward.4} parent=0 // pred_region
    _
  $region9: #{rnn_language_model_forward.4} parent=0 // pred_fallthru
    _
  // Predicated region
  $region10: #{rnn_language_model_forward.4} parent=0 // pred_check
    _
  $region11: #{rnn_language_model_forward.4} parent=0 // pred_check_branch
    %13 = sbr.rel (0) target = $region13
  $region12: #{rnn_language_model_forward.4} parent=0 // pred_region
    _
  $region13: #{rnn_language_model_forward.4} parent=0 // pred_fallthru
    _
  %p15 = scmp.eq.s32.totalorder 0, 0
  // Predicated region
  $region14: #{rnn_language_model_forward.4} parent=0 // pred_check
    %p16 = pneg %p15
  $region15: #{rnn_language_model_forward.4} parent=0 // pred_check_branch
    %18 = sbr.rel (%p16) target = $region17
  $region16: #{rnn_language_model_forward.4} parent=0 // pred_region
    %vm19 = vcmask 7168
    %20 = vst.msk [vmem:[#allocation2] sm:$0xff] %vm19, -inf
    %21 = vst.msk [vmem:[#allocation2 + $0x8] sm:$0xff] %vm19, -inf
    %22 = vst.msk [vmem:[#allocation3] sm:$0xff] %vm19, 0.0
    %23 = vst.msk [vmem:[#allocation3 + $0x8] sm:$0xff] %vm19, 0.0
  $region17: #{rnn_language_model_forward.4} parent=0 // pred_fallthru
    _
  %v24 = vld [vmem:[%s0] sm:$0xf]
  %v25 = vld [vmem:[%s0 + $0x4] sm:$0xf]
  %v26 = vld [vmem:[%s1] sm:$0xff]
  %v27 = vld [vmem:[%s1 + $0x8] sm:$0xff]
  %v28 = vld [vmem:[%s1 + $0x10] sm:$0xff]
  %v29 = vld [vmem:[%s1 + $0x18] sm:$0xff]
  %v30 = vld [vmem:[%s1 + $0x20] sm:$0xff]
  %v31 = vld [vmem:[%s1 + $0x28] sm:$0xff]
  %v32 = vld [vmem:[%s1 + $0x30] sm:$0xff]
  %v33 = vld [vmem:[%s1 + $0x38] sm:$0xff]
  %v34 = vld [vmem:[%s1 + $0x40] sm:$0xff]
  %v35 = vld [vmem:[%s1 + $0x48] sm:$0xff]
  %v36 = vld [vmem:[%s1 + $0x50] sm:$0xff]
  %v37 = vld [vmem:[%s1 + $0x58] sm:$0xff]
  %v38 = vld [vmem:[%s1 + $0x60] sm:$0xff]
  %v39 = vld [vmem:[%s1 + $0x68] sm:$0xff]
  %v40 = vld [vmem:[%s1 + $0x70] sm:$0xff]
  %v41 = vld [vmem:[%s1 + $0x78] sm:$0xff]
  %v42 = vld [vmem:[%s2] sm:$0x3]
  %v44 = vlaneseq
  %v45 = vshrl.u32 %v44, 7
  %v46 = vsub.s32 0, %v45
  %v47 = vrot.slane %v42, %v46
  %v48 = vlaneseq
  %v49 = vshrl.u32 %v48, 7
  %v50 = vsub.s32 1, %v49
  %v51 = vrot.slane %v42, %v50
  %v56 = vunpack.c.l.b16 %v24
  %v57 = vunpack.c.l.b16 %v25
  %v58 = vpack.c.b16 %v57, %v56
  %v76 = vunpack.c.l.b16 %v26
  %v77 = vunpack.c.h.b16 %v26
  %v78 = vunpack.c.l.b16 %v27
  %v79 = vunpack.c.h.b16 %v27
  %v80 = vunpack.c.l.b16 %v28
  %v81 = vunpack.c.h.b16 %v28
  %v82 = vunpack.c.l.b16 %v29
  %v83 = vunpack.c.h.b16 %v29
  %v84 = vunpack.c.l.b16 %v30
  %v85 = vunpack.c.h.b16 %v30
  %v86 = vunpack.c.l.b16 %v31
  %v87 = vunpack.c.h.b16 %v31
  %v88 = vunpack.c.l.b16 %v32
  %v89 = vunpack.c.h.b16 %v32
  %v90 = vunpack.c.l.b16 %v33
  %v91 = vunpack.c.h.b16 %v33
  %v92 = vunpack.c.l.b16 %v34
  %v93 = vunpack.c.h.b16 %v34
  %v94 = vunpack.c.l.b16 %v35
  %v95 = vunpack.c.h.b16 %v35
  %v96 = vunpack.c.l.b16 %v36
  %v97 = vunpack.c.h.b16 %v36
  %v98 = vunpack.c.l.b16 %v37
  %v99 = vunpack.c.h.b16 %v37
  %v100 = vunpack.c.l.b16 %v38
  %v101 = vunpack.c.h.b16 %v38
  %v102 = vunpack.c.l.b16 %v39
  %v103 = vunpack.c.h.b16 %v39
  %v104 = vunpack.c.l.b16 %v40
  %v105 = vunpack.c.h.b16 %v40
  %v106 = vunpack.c.l.b16 %v41
  %v107 = vunpack.c.h.b16 %v41
  %v108 = vpack.c.b16 %v78, %v76
  %v109 = vpack.c.b16 %v79, %v77
  %v110 = vpack.c.b16 %v82, %v80
  %v111 = vpack.c.b16 %v83, %v81
  %v112 = vpack.c.b16 %v86, %v84
  %v113 = vpack.c.b16 %v87, %v85
  %v114 = vpack.c.b16 %v90, %v88
  %v115 = vpack.c.b16 %v91, %v89
  %v116 = vpack.c.b16 %v94, %v92
  %v117 = vpack.c.b16 %v95, %v93
  %v118 = vpack.c.b16 %v98, %v96
  %v119 = vpack.c.b16 %v99, %v97
  %v120 = vpack.c.b16 %v102, %v100
  %v121 = vpack.c.b16 %v103, %v101
  %v122 = vpack.c.b16 %v106, %v104
  %v123 = vpack.c.b16 %v107, %v105
  %140 = vmatprep.subr.bf16.mxu0 %v109
  %141 = vmatpush1.bf16.msra.mxu0 %v108
  %142 = vmatprep.subr.bf16.mxu0 %v111
  %143 = vmatpush1.bf16.msra.mxu0 %v110
  %144 = vmatprep.subr.bf16.mxu0 %v113
  %145 = vmatpush1.bf16.msra.mxu0 %v112
  %146 = vmatprep.subr.bf16.mxu0 %v115
  %147 = vmatpush1.bf16.msra.mxu0 %v114
  %148 = vmatprep.subr.bf16.mxu0 %v117
  %149 = vmatpush1.bf16.msra.mxu0 %v116
  %150 = vmatprep.subr.bf16.mxu0 %v119
  %151 = vmatpush1.bf16.msra.mxu0 %v118
  %152 = vmatprep.subr.bf16.mxu0 %v121
  %153 = vmatpush1.bf16.msra.mxu0 %v120
  %154 = vmatprep.subr.bf16.mxu0 %v123
  %155 = vmatpush1.bf16.msra.mxu0 %v122
  %156 = vmatprep.subr.bf16.mxu0 0
  %157 = vmatpush1.bf16.msra.mxu0 0
  %158 = vmatprep.subr.bf16.mxu0 0
  %159 = vmatpush1.bf16.msra.mxu0 0
  %160 = vmatprep.subr.bf16.mxu0 0
  %161 = vmatpush1.bf16.msra.mxu0 0
  %162 = vmatprep.subr.bf16.mxu0 0
  %163 = vmatpush1.bf16.msra.mxu0 0
  %164 = vmatprep.subr.bf16.mxu0 0
  %165 = vmatpush1.bf16.msra.mxu0 0
  %166 = vmatprep.subr.bf16.mxu0 0
  %167 = vmatpush1.bf16.msra.mxu0 0
  %168 = vmatprep.subr.bf16.mxu0 0
  %169 = vmatpush1.bf16.msra.mxu0 0
  %170 = vmatprep.subr.bf16.mxu0 0
  %171 = vmatpush1.bf16.msra.mxu0 0
  %172 = vmatprep.mubr.bf16.mxu0 0
  %173 = vmatmul.mubr.bf16.gmra.mrb[0].mxu0 %v58
  %v174 = vpop.f32.mrb[0].mxu0
  %v175 = vadd.f32 %v47, %v174
  %v176 = vpop.f32.mrb[0].mxu0
  %v177 = vadd.f32 %v51, %v176
  %v178 = vpop.f32.mrb[0].mxu0
  %v179 = vadd.f32 %v47, %v178
  %v180 = vpop.f32.mrb[0].mxu0
  %v181 = vadd.f32 %v51, %v180
  %182 = vdwg.mxu0
  %v183 = vld [vmem:[#allocation2] sm:$0xff]
  %v184 = vld [vmem:[#allocation2 + $0x8] sm:$0xff]
  %v185 = vmax.f32 %v175, %v177
  %186 = vmax.xlane.f32.xlu0 %v185
  %v187 = vpop.xlane.xlu0 %186
  %v188 = vmax.f32 %v179, %v181
  %189 = vmax.xlane.f32.xlu0 %v188
  %v190 = vpop.xlane.xlu0 %189
  %v191 = vmax.f32 %v183, %v187
  %v192 = vmax.f32 %v184, %v190
  %v193 = vld [vmem:[#allocation3] sm:$0xff]
  %v194 = vld [vmem:[#allocation3 + $0x8] sm:$0xff]
  %v195 = vsub.f32 %v183, %v191
  %v196 = vsub.f32 %v184, %v192
  %v197 = vmul.f32 %v195, 1.442695
  %v198 = vpow.pop %v197
  %v199 = vmul.f32 %v196, 1.442695
  %v200 = vpow.pop %v199
  %v201 = vmul.f32 %v193, %v198
  %v202 = vmul.f32 %v194, %v200
  %204 = vset.pattern.permute.xlu0 0
  %205 = vperm.xlu0 %204, %v191
  %v206 = vpop.permute.xlu0 %205
  %209 = vset.pattern.permute.xlu0 0
  %210 = vperm.xlu0 %209, %v192
  %v211 = vpop.permute.xlu0 %210
  %v213 = vsub.f32 %v175, %v206
  %v214 = vsub.f32 %v177, %v206
  %v215 = vsub.f32 %v179, %v211
  %v216 = vsub.f32 %v181, %v211
  %v217 = vmul.f32 %v213, 1.442695
  %v218 = vpow.pop %v217
  %v219 = vmul.f32 %v214, 1.442695
  %v220 = vpow.pop %v219
  %v221 = vmul.f32 %v215, 1.442695
  %v222 = vpow.pop %v221
  %v223 = vmul.f32 %v216, 1.442695
  %v224 = vpow.pop %v223
  %v225 = vadd.f32 %v218, %v220
  %226 = vadd.xlane.f32.xlu0 %v225
  %v227 = vpop.xlane.xlu0 %226
  %v228 = vadd.f32 %v222, %v224
  %229 = vadd.xlane.f32.xlu0 %v228
  %v230 = vpop.xlane.xlu0 %229
  %v231 = vadd.f32 %v201, %v227
  %v232 = vadd.f32 %v202, %v230
  %vm233 = vcmask 7168
  %234 = vst.msk [vmem:[#allocation3] sm:$0xff] %vm233, %v231
  %235 = vst.msk [vmem:[#allocation3 + $0x8] sm:$0xff] %vm233, %v232
  %236 = vst.msk [vmem:[#allocation2] sm:$0xff] %vm233, %v191
  %237 = vst.msk [vmem:[#allocation2 + $0x8] sm:$0xff] %vm233, %v192
  // Predicated region
  $region18: #{rnn_language_model_forward.4} parent=0 // pred_check
    %p238 = pneg %p15
  $region19: #{rnn_language_model_forward.4} parent=0 // pred_check_branch
    %240 = sbr.rel (%p238) target = $region21
  $region20: #{rnn_language_model_forward.4} parent=0 // pred_region
    %v241 = vld [vmem:[#allocation2] sm:$0xff]
    %v242 = vld [vmem:[#allocation2 + $0x8] sm:$0xff]
    %v243 = vld [vmem:[#allocation3] sm:$0xff]
    %v244 = vld [vmem:[#allocation3 + $0x8] sm:$0xff]
    %v245 = vlog2.pop %v243
    %v246 = vmul.f32 %v245, 0.6931472
    %v247 = vlog2.pop %v244
    %v248 = vmul.f32 %v247, 0.6931472
    %v249 = vadd.f32 %v241, %v246
    %v250 = vadd.f32 %v242, %v248
    %251 = vst.msk [vmem:[%s3] sm:$0xff] %vm233, %v249
    %252 = vst.msk [vmem:[%s3 + $0x8] sm:$0xff] %vm233, %v250
  $region21: #{rnn_language_model_forward.4} parent=0 // pred_fallthru
    _
  // Predicated region
  $region22: #{rnn_language_model_forward.4} parent=0 // pred_check
    _
  $region23: #{rnn_language_model_forward.4} parent=0 // pred_check_branch
    %254 = sbr.rel (0) target = $region25
  $region24: #{rnn_language_model_forward.4} parent=0 // pred_region
    _
  $region25: #{rnn_language_model_forward.4} parent=0 // pred_fallthru
    _
  // Predicated region
  $region26: #{rnn_language_model_forward.4} parent=0 // pred_check
    _
  $region27: #{rnn_language_model_forward.4} parent=0 // pred_check_branch
    %256 = sbr.rel (0) target = $region29
  $region28: #{rnn_language_model_forward.4} parent=0 // pred_region
    _
  $region29: #{rnn_language_model_forward.4} parent=0 // pred_fallthru
    _

// kernel: rnn_language_model_forward.5
$region0: #{rnn_language_model_forward.5}
  #allocation0 [shape = 'u32[]', space=smem, size = 0x4, offset = 0x4, fixed_abs, tag = 'smem constant byte address 0x4 - core index']
  #allocation1 [shape = 'u32[144,128]{1,0:T(1,128)}', space=vmem, size = 0x12000, scoped, tag = 'internal scratch']
  %s0 = inlined_call_operand.vmem [shape: bf16[16,128], index: 0, kind: input, shape index: {}]
  %s1 = inlined_call_operand.vmem [shape: bf16[128,256], index: 1, kind: input, shape index: {}]
  %s2 = inlined_call_operand.vmem [shape: f32[1,256], index: 2, kind: input, shape index: {}]
  %s3 = inlined_call_operand.vmem [shape: f32[16,1], index: 3, kind: input, shape index: {}]
  %s4 = inlined_call_operand.vmem [shape: f32[16,256], index: 4, kind: output, shape index: {}]
  %s5 = sld [smem:[#allocation0]]
  $region26: #{rnn_language_model_forward.5} parent=0
    _
  %s7 = ssub.s32 1, %s5
  %s8 = scalar_select 0, %s7, %s5
  // Predicated region
  $region2: #{rnn_language_model_forward.5} parent=0 // pred_check
    _
  $region3: #{rnn_language_model_forward.5} parent=0 // pred_check_branch
    %10 = sbr.rel (0) target = $region5
  $region4: #{rnn_language_model_forward.5} parent=0 // pred_region
    _
  $region5: #{rnn_language_model_forward.5} parent=0 // pred_fallthru
    _
  // Predicated region
  $region6: #{rnn_language_model_forward.5} parent=0 // pred_check
    _
  $region7: #{rnn_language_model_forward.5} parent=0 // pred_check_branch
    %12 = sbr.rel (0) target = $region9
  $region8: #{rnn_language_model_forward.5} parent=0 // pred_region
    _
  $region9: #{rnn_language_model_forward.5} parent=0 // pred_fallthru
    _
  // Predicated region
  $region10: #{rnn_language_model_forward.5} parent=0 // pred_check
    _
  $region11: #{rnn_language_model_forward.5} parent=0 // pred_check_branch
    %14 = sbr.rel (0) target = $region13
  $region12: #{rnn_language_model_forward.5} parent=0 // pred_region
    _
  $region13: #{rnn_language_model_forward.5} parent=0 // pred_fallthru
    _
  // Predicated region
  $region14: #{rnn_language_model_forward.5} parent=0 // pred_check
    _
  $region15: #{rnn_language_model_forward.5} parent=0 // pred_check_branch
    %16 = sbr.rel (0) target = $region17
  $region16: #{rnn_language_model_forward.5} parent=0 // pred_region
    _
  $region17: #{rnn_language_model_forward.5} parent=0 // pred_fallthru
    _
  %v18 = vld [vmem:[%s0] sm:$0xf]
  %v19 = vld [vmem:[%s0 + $0x4] sm:$0xf]
  %v20 = vld [vmem:[%s1] sm:$0xff]
  %v21 = vld [vmem:[%s1 + $0x8] sm:$0xff]
  %v22 = vld [vmem:[%s1 + $0x10] sm:$0xff]
  %v23 = vld [vmem:[%s1 + $0x18] sm:$0xff]
  %v24 = vld [vmem:[%s1 + $0x20] sm:$0xff]
  %v25 = vld [vmem:[%s1 + $0x28] sm:$0xff]
  %v26 = vld [vmem:[%s1 + $0x30] sm:$0xff]
  %v27 = vld [vmem:[%s1 + $0x38] sm:$0xff]
  %v28 = vld [vmem:[%s1 + $0x40] sm:$0xff]
  %v29 = vld [vmem:[%s1 + $0x48] sm:$0xff]
  %v30 = vld [vmem:[%s1 + $0x50] sm:$0xff]
  %v31 = vld [vmem:[%s1 + $0x58] sm:$0xff]
  %v32 = vld [vmem:[%s1 + $0x60] sm:$0xff]
  %v33 = vld [vmem:[%s1 + $0x68] sm:$0xff]
  %v34 = vld [vmem:[%s1 + $0x70] sm:$0xff]
  %v35 = vld [vmem:[%s1 + $0x78] sm:$0xff]
  %v36 = vld [vmem:[%s2] sm:$0x3]
  %v38 = vlaneseq
  %v39 = vshrl.u32 %v38, 7
  %v40 = vsub.s32 0, %v39
  %v41 = vrot.slane %v36, %v40
  %v42 = vlaneseq
  %v43 = vshrl.u32 %v42, 7
  %v44 = vsub.s32 1, %v43
  %v45 = vrot.slane %v36, %v44
  %v50 = vunpack.c.l.b16 %v18
  %v51 = vunpack.c.l.b16 %v19
  %v52 = vpack.c.b16 %v51, %v50
  %v70 = vunpack.c.l.b16 %v20
  %v71 = vunpack.c.h.b16 %v20
  %v72 = vunpack.c.l.b16 %v21
  %v73 = vunpack.c.h.b16 %v21
  %v74 = vunpack.c.l.b16 %v22
  %v75 = vunpack.c.h.b16 %v22
  %v76 = vunpack.c.l.b16 %v23
  %v77 = vunpack.c.h.b16 %v23
  %v78 = vunpack.c.l.b16 %v24
  %v79 = vunpack.c.h.b16 %v24
  %v80 = vunpack.c.l.b16 %v25
  %v81 = vunpack.c.h.b16 %v25
  %v82 = vunpack.c.l.b16 %v26
  %v83 = vunpack.c.h.b16 %v26
  %v84 = vunpack.c.l.b16 %v27
  %v85 = vunpack.c.h.b16 %v27
  %v86 = vunpack.c.l.b16 %v28
  %v87 = vunpack.c.h.b16 %v28
  %v88 = vunpack.c.l.b16 %v29
  %v89 = vunpack.c.h.b16 %v29
  %v90 = vunpack.c.l.b16 %v30
  %v91 = vunpack.c.h.b16 %v30
  %v92 = vunpack.c.l.b16 %v31
  %v93 = vunpack.c.h.b16 %v31
  %v94 = vunpack.c.l.b16 %v32
  %v95 = vunpack.c.h.b16 %v32
  %v96 = vunpack.c.l.b16 %v33
  %v97 = vunpack.c.h.b16 %v33
  %v98 = vunpack.c.l.b16 %v34
  %v99 = vunpack.c.h.b16 %v34
  %v100 = vunpack.c.l.b16 %v35
  %v101 = vunpack.c.h.b16 %v35
  %v102 = vpack.c.b16 %v72, %v70
  %v103 = vpack.c.b16 %v73, %v71
  %v104 = vpack.c.b16 %v76, %v74
  %v105 = vpack.c.b16 %v77, %v75
  %v106 = vpack.c.b16 %v80, %v78
  %v107 = vpack.c.b16 %v81, %v79
  %v108 = vpack.c.b16 %v84, %v82
  %v109 = vpack.c.b16 %v85, %v83
  %v110 = vpack.c.b16 %v88, %v86
  %v111 = vpack.c.b16 %v89, %v87
  %v112 = vpack.c.b16 %v92, %v90
  %v113 = vpack.c.b16 %v93, %v91
  %v114 = vpack.c.b16 %v96, %v94
  %v115 = vpack.c.b16 %v97, %v95
  %v116 = vpack.c.b16 %v100, %v98
  %v117 = vpack.c.b16 %v101, %v99
  %134 = vmatprep.subr.bf16.mxu0 %v103
  %135 = vmatpush1.bf16.msra.mxu0 %v102
  %136 = vmatprep.subr.bf16.mxu0 %v105
  %137 = vmatpush1.bf16.msra.mxu0 %v104
  %138 = vmatprep.subr.bf16.mxu0 %v107
  %139 = vmatpush1.bf16.msra.mxu0 %v106
  %140 = vmatprep.subr.bf16.mxu0 %v109
  %141 = vmatpush1.bf16.msra.mxu0 %v108
  %142 = vmatprep.subr.bf16.mxu0 %v111
  %143 = vmatpush1.bf16.msra.mxu0 %v110
  %144 = vmatprep.subr.bf16.mxu0 %v113
  %145 = vmatpush1.bf16.msra.mxu0 %v112
  %146 = vmatprep.subr.bf16.mxu0 %v115
  %147 = vmatpush1.bf16.msra.mxu0 %v114
  %148 = vmatprep.subr.bf16.mxu0 %v117
  %149 = vmatpush1.bf16.msra.mxu0 %v116
  %150 = vmatprep.subr.bf16.mxu0 0
  %151 = vmatpush1.bf16.msra.mxu0 0
  %152 = vmatprep.subr.bf16.mxu0 0
  %153 = vmatpush1.bf16.msra.mxu0 0
  %154 = vmatprep.subr.bf16.mxu0 0
  %155 = vmatpush1.bf16.msra.mxu0 0
  %156 = vmatprep.subr.bf16.mxu0 0
  %157 = vmatpush1.bf16.msra.mxu0 0
  %158 = vmatprep.subr.bf16.mxu0 0
  %159 = vmatpush1.bf16.msra.mxu0 0
  %160 = vmatprep.subr.bf16.mxu0 0
  %161 = vmatpush1.bf16.msra.mxu0 0
  %162 = vmatprep.subr.bf16.mxu0 0
  %163 = vmatpush1.bf16.msra.mxu0 0
  %164 = vmatprep.subr.bf16.mxu0 0
  %165 = vmatpush1.bf16.msra.mxu0 0
  %166 = vmatprep.mubr.bf16.mxu0 0
  %167 = vmatmul.mubr.bf16.gmra.mrb[0].mxu0 %v52
  %v168 = vpop.f32.mrb[0].mxu0
  %v169 = vadd.f32 %v41, %v168
  %v170 = vpop.f32.mrb[0].mxu0
  %v171 = vadd.f32 %v45, %v170
  %v172 = vpop.f32.mrb[0].mxu0
  %v173 = vadd.f32 %v41, %v172
  %v174 = vpop.f32.mrb[0].mxu0
  %v175 = vadd.f32 %v45, %v174
  %176 = vdwg.mxu0
  %v177 = vld [vmem:[%s3] sm:$0xff]
  %v178 = vld [vmem:[%s3 + $0x8] sm:$0xff]
  %180 = vset.pattern.permute.xlu0 0
  %181 = vperm.xlu0 %180, %v177
  %v182 = vpop.permute.xlu0 %181
  %185 = vset.pattern.permute.xlu0 0
  %186 = vperm.xlu0 %185, %v178
  %v187 = vpop.permute.xlu0 %186
  %v189 = vsub.f32 %v169, %v182
  %v190 = vsub.f32 %v171, %v182
  %v191 = vsub.f32 %v173, %v187
  %v192 = vsub.f32 %v175, %v187
  %193 = vst [vmem:[%s4] sm:$0xff] %v189
  %194 = vst [vmem:[%s4 + $0x8] sm:$0xff] %v190
  %195 = vst [vmem:[%s4 + $0x10] sm:$0xff] %v191
  %196 = vst [vmem:[%s4 + $0x18] sm:$0xff] %v192
  // Predicated region
  $region18: #{rnn_language_model_forward.5} parent=0 // pred_check
    _
  $region19: #{rnn_language_model_forward.5} parent=0 // pred_check_branch
    %198 = sbr.rel (0) target = $region21
  $region20: #{rnn_language_model_forward.5} parent=0 // pred_region
    _
  $region21: #{rnn_language_model_forward.5} parent=0 // pred_fallthru
    _
  // Predicated region
  $region22: #{rnn_language_model_forward.5} parent=0 // pred_check
    _
  $region23: #{rnn_language_model_forward.5} parent=0 // pred_check_branch
    %200 = sbr.rel (0) target = $region25
  $region24: #{rnn_language_model_forward.5} parent=0 // pred_region
    _
  $region25: #{rnn_language_model_forward.5} parent=0 // pred_fallthru
    _

// kernel: rnn_language_model_forward.3
$region0: #{rnn_language_model_forward.3}
  #allocation0 [shape = 'u32[]', space=smem, size = 0x4, offset = 0x4, fixed_abs, tag = 'smem constant byte address 0x4 - core index']
  #allocation1 [shape = 'u32[144,128]{1,0:T(1,128)}', space=vmem, size = 0x12000, scoped, tag = 'internal scratch']
  #allocation2 [shape = 'f32[16,128]{1,0:T(8,128)}', space=vmem, size = 0x2000, scoped, tag = 'scratch operand']
  #allocation3 [shape = 'f32[8,16,128]{2,1,0:T(8,128)}', space=vmem, size = 0x10000, scoped, tag = 'scratch operand']
  %s0 = inlined_call_operand.vmem [shape: bf16[8,16,128], index: 0, kind: input, shape index: {}]
  %s1 = inlined_call_operand.vmem [shape: bf16[128,128], index: 1, kind: input, shape index: {}]
  %s2 = inlined_call_operand.vmem [shape: bf16[128,128], index: 2, kind: input, shape index: {}]
  %s3 = inlined_call_operand.vmem [shape: f32[1,128], index: 3, kind: input, shape index: {}]
  %s4 = inlined_call_operand.vmem [shape: f32[16,128], index: 4, kind: output, shape index: {}]
  %s5 = sld [smem:[#allocation0]]
  $region34: #{rnn_language_model_forward.3} parent=0
    _
  %s7 = ssub.s32 1, %s5
  %s8 = scalar_select 0, %s7, %s5
  // Predicated region
  $region2: #{rnn_language_model_forward.3} parent=0 // pred_check
    _
  $region3: #{rnn_language_model_forward.3} parent=0 // pred_check_branch
    %10 = sbr.rel (0) target = $region5
  $region4: #{rnn_language_model_forward.3} parent=0 // pred_region
    _
  $region5: #{rnn_language_model_forward.3} parent=0 // pred_fallthru
    _
  // Predicated region
  $region6: #{rnn_language_model_forward.3} parent=0 // pred_check
    _
  $region7: #{rnn_language_model_forward.3} parent=0 // pred_check_branch
    %12 = sbr.rel (0) target = $region9
  $region8: #{rnn_language_model_forward.3} parent=0 // pred_region
    _
  $region9: #{rnn_language_model_forward.3} parent=0 // pred_fallthru
    _
  // Predicated region
  $region10: #{rnn_language_model_forward.3} parent=0 // pred_check
    _
  $region11: #{rnn_language_model_forward.3} parent=0 // pred_check_branch
    %14 = sbr.rel (0) target = $region13
  $region12: #{rnn_language_model_forward.3} parent=0 // pred_region
    _
  $region13: #{rnn_language_model_forward.3} parent=0 // pred_fallthru
    _
  // Predicated region
  $region14: #{rnn_language_model_forward.3} parent=0 // pred_check
    _
  $region15: #{rnn_language_model_forward.3} parent=0 // pred_check_branch
    %16 = sbr.rel (0) target = $region17
  $region16: #{rnn_language_model_forward.3} parent=0 // pred_region
    _
  $region17: #{rnn_language_model_forward.3} parent=0 // pred_fallthru
    _
  %p18 = scmp.eq.s32.totalorder 0, 0
  // Predicated region
  $region18: #{rnn_language_model_forward.3} parent=0 // pred_check
    %p19 = pneg %p18
  $region19: #{rnn_language_model_forward.3} parent=0 // pred_check_branch
    %21 = sbr.rel (%p19) target = $region21
  $region20: #{rnn_language_model_forward.3} parent=0 // pred_region
    %22 = vst [vmem:[#allocation2] sm:$0xff] 0.0
    %23 = vst [vmem:[#allocation2 + $0x8] sm:$0xff] 0.0
  $region21: #{rnn_language_model_forward.3} parent=0 // pred_fallthru
    _
  %v24 = vld [vmem:[%s0] sm:$0xf]
  %v25 = vld [vmem:[%s0 + $0x4] sm:$0xf]
  %v26 = vld [vmem:[%s0 + $0x8] sm:$0xf]
  %v27 = vld [vmem:[%s0 + $0xc] sm:$0xf]
  %v28 = vld [vmem:[%s0 + $0x10] sm:$0xf]
  %v29 = vld [vmem:[%s0 + $0x14] sm:$0xf]
  %v30 = vld [vmem:[%s0 + $0x18] sm:$0xf]
  %v31 = vld [vmem:[%s0 + $0x1c] sm:$0xf]
  %v32 = vld [vmem:[%s0 + $0x20] sm:$0xf]
  %v33 = vld [vmem:[%s0 + $0x24] sm:$0xf]
  %v34 = vld [vmem:[%s0 + $0x28] sm:$0xf]
  %v35 = vld [vmem:[%s0 + $0x2c] sm:$0xf]
  %v36 = vld [vmem:[%s0 + $0x30] sm:$0xf]
  %v37 = vld [vmem:[%s0 + $0x34] sm:$0xf]
  %v38 = vld [vmem:[%s0 + $0x38] sm:$0xf]
  %v39 = vld [vmem:[%s0 + $0x3c] sm:$0xf]
  %v40 = vld [vmem:[%s1] sm:$0xf]
  %v41 = vld [vmem:[%s1 + $0x4] sm:$0xf]
  %v42 = vld [vmem:[%s1 + $0x8] sm:$0xf]
  %v43 = vld [vmem:[%s1 + $0xc] sm:$0xf]
  %v44 = vld [vmem:[%s1 + $0x10] sm:$0xf]
  %v45 = vld [vmem:[%s1 + $0x14] sm:$0xf]
  %v46 = vld [vmem:[%s1 + $0x18] sm:$0xf]
  %v47 = vld [vmem:[%s1 + $0x1c] sm:$0xf]
  %v48 = vld [vmem:[%s1 + $0x20] sm:$0xf]
  %v49 = vld [vmem:[%s1 + $0x24] sm:$0xf]
  %v50 = vld [vmem:[%s1 + $0x28] sm:$0xf]
  %v51 = vld [vmem:[%s1 + $0x2c] sm:$0xf]
  %v52 = vld [vmem:[%s1 + $0x30] sm:$0xf]
  %v53 = vld [vmem:[%s1 + $0x34] sm:$0xf]
  %v54 = vld [vmem:[%s1 + $0x38] sm:$0xf]
  %v55 = vld [vmem:[%s1 + $0x3c] sm:$0xf]
  %v56 = vld [vmem:[%s3] sm:$0x1]
  %v58 = vlaneseq
  %v59 = vshrl.u32 %v58, 7
  %v60 = vsub.s32 0, %v59
  %v61 = vrot.slane %v56, %v60
  %v79 = vunpack.c.l.b16 %v24
  %v80 = vunpack.c.l.b16 %v25
  %v81 = vunpack.c.l.b16 %v26
  %v82 = vunpack.c.l.b16 %v27
  %v83 = vunpack.c.l.b16 %v28
  %v84 = vunpack.c.l.b16 %v29
  %v85 = vunpack.c.l.b16 %v30
  %v86 = vunpack.c.l.b16 %v31
  %v87 = vunpack.c.l.b16 %v32
  %v88 = vunpack.c.l.b16 %v33
  %v89 = vunpack.c.l.b16 %v34
  %v90 = vunpack.c.l.b16 %v35
  %v91 = vunpack.c.l.b16 %v36
  %v92 = vunpack.c.l.b16 %v37
  %v93 = vunpack.c.l.b16 %v38
  %v94 = vunpack.c.l.b16 %v39
  %v95 = vpack.c.b16 %v80, %v79
  %v96 = vpack.c.b16 %v82, %v81
  %v97 = vpack.c.b16 %v84, %v83
  %v98 = vpack.c.b16 %v86, %v85
  %v99 = vpack.c.b16 %v88, %v87
  %v100 = vpack.c.b16 %v90, %v89
  %v101 = vpack.c.b16 %v92, %v91
  %v102 = vpack.c.b16 %v94, %v93
  %v127 = vunpack.c.l.b16 %v40
  %v128 = vunpack.c.l.b16 %v41
  %v129 = vunpack.c.l.b16 %v42
  %v130 = vunpack.c.l.b16 %v43
  %v131 = vunpack.c.l.b16 %v44
  %v132 = vunpack.c.l.b16 %v45
  %v133 = vunpack.c.l.b16 %v46
  %v134 = vunpack.c.l.b16 %v47
  %v135 = vunpack.c.l.b16 %v48
  %v136 = vunpack.c.l.b16 %v49
  %v137 = vunpack.c.l.b16 %v50
  %v138 = vunpack.c.l.b16 %v51
  %v139 = vunpack.c.l.b16 %v52
  %v140 = vunpack.c.l.b16 %v53
  %v141 = vunpack.c.l.b16 %v54
  %v142 = vunpack.c.l.b16 %v55
  %v143 = vpack.c.b16 %v128, %v127
  %v144 = vpack.c.b16 %v130, %v129
  %v145 = vpack.c.b16 %v132, %v131
  %v146 = vpack.c.b16 %v134, %v133
  %v147 = vpack.c.b16 %v136, %v135
  %v148 = vpack.c.b16 %v138, %v137
  %v149 = vpack.c.b16 %v140, %v139
  %v150 = vpack.c.b16 %v142, %v141
  %159 = vmatprep.subr.bf16.mxu0 0
  %160 = vmatpush1.bf16.msra.mxu0 %v143
  %161 = vmatprep.subr.bf16.mxu0 0
  %162 = vmatpush1.bf16.msra.mxu0 %v144
  %163 = vmatprep.subr.bf16.mxu0 0
  %164 = vmatpush1.bf16.msra.mxu0 %v145
  %165 = vmatprep.subr.bf16.mxu0 0
  %166 = vmatpush1.bf16.msra.mxu0 %v146
  %167 = vmatprep.subr.bf16.mxu0 0
  %168 = vmatpush1.bf16.msra.mxu0 %v147
  %169 = vmatprep.subr.bf16.mxu0 0
  %170 = vmatpush1.bf16.msra.mxu0 %v148
  %171 = vmatprep.subr.bf16.mxu0 0
  %172 = vmatpush1.bf16.msra.mxu0 %v149
  %173 = vmatprep.subr.bf16.mxu0 0
  %174 = vmatpush1.bf16.msra.mxu0 %v150
  %175 = vmatprep.subr.bf16.mxu0 0
  %176 = vmatpush1.bf16.msra.mxu0 0
  %177 = vmatprep.subr.bf16.mxu0 0
  %178 = vmatpush1.bf16.msra.mxu0 0
  %179 = vmatprep.subr.bf16.mxu0 0
  %180 = vmatpush1.bf16.msra.mxu0 0
  %181 = vmatprep.subr.bf16.mxu0 0
  %182 = vmatpush1.bf16.msra.mxu0 0
  %183 = vmatprep.subr.bf16.mxu0 0
  %184 = vmatpush1.bf16.msra.mxu0 0
  %185 = vmatprep.subr.bf16.mxu0 0
  %186 = vmatpush1.bf16.msra.mxu0 0
  %187 = vmatprep.subr.bf16.mxu0 0
  %188 = vmatpush1.bf16.msra.mxu0 0
  %189 = vmatprep.subr.bf16.mxu0 0
  %190 = vmatpush1.bf16.msra.mxu0 0
  %191 = vmatprep.mubr.bf16.mxu0 0
  %192 = vmatmul.mubr.bf16.gmra.mrb[0].mxu0 %v95
  %v193 = vpop.f32.mrb[0].mxu0
  %v194 = vadd.f32 %v61, %v193
  %v195 = vpop.f32.mrb[0].mxu0
  %v196 = vpop.f32.mrb[0].mxu0
  %v197 = vadd.f32 %v61, %v196
  %v198 = vpop.f32.mrb[0].mxu0
  %199 = vmatprep.mubr.bf16.mxu0 0
  %200 = vmatmul.mubr.bf16.gmra.mrb[0].mxu0 %v96
  %v201 = vpop.f32.mrb[0].mxu0
  %v202 = vadd.f32 %v61, %v201
  %v203 = vpop.f32.mrb[0].mxu0
  %v204 = vpop.f32.mrb[0].mxu0
  %v205 = vadd.f32 %v61, %v204
  %v206 = vpop.f32.mrb[0].mxu0
  %207 = vmatprep.mubr.bf16.mxu0 0
  %208 = vmatmul.mubr.bf16.gmra.mrb[0].mxu0 %v97
  %v209 = vpop.f32.mrb[0].mxu0
  %v210 = vadd.f32 %v61, %v209
  %v211 = vpop.f32.mrb[0].mxu0
  %v212 = vpop.f32.mrb[0].mxu0
  %v213 = vadd.f32 %v61, %v212
  %v214 = vpop.f32.mrb[0].mxu0
  %215 = vmatprep.mubr.bf16.mxu0 0
  %216 = vmatmul.mubr.bf16.gmra.mrb[0].mxu0 %v98
  %v217 = vpop.f32.mrb[0].mxu0
  %v218 = vadd.f32 %v61, %v217
  %v219 = vpop.f32.mrb[0].mxu0
  %v220 = vpop.f32.mrb[0].mxu0
  %v221 = vadd.f32 %v61, %v220
  %v222 = vpop.f32.mrb[0].mxu0
  %223 = vmatprep.mubr.bf16.mxu0 0
  %224 = vmatmul.mubr.bf16.gmra.mrb[0].mxu0 %v99
  %v225 = vpop.f32.mrb[0].mxu0
  %v226 = vadd.f32 %v61, %v225
  %v227 = vpop.f32.mrb[0].mxu0
  %v228 = vpop.f32.mrb[0].mxu0
  %v229 = vadd.f32 %v61, %v228
  %v230 = vpop.f32.mrb[0].mxu0
  %231 = vmatprep.mubr.bf16.mxu0 0
  %232 = vmatmul.mubr.bf16.gmra.mrb[0].mxu0 %v100
  %v233 = vpop.f32.mrb[0].mxu0
  %v234 = vadd.f32 %v61, %v233
  %v235 = vpop.f32.mrb[0].mxu0
  %v236 = vpop.f32.mrb[0].mxu0
  %v237 = vadd.f32 %v61, %v236
  %v238 = vpop.f32.mrb[0].mxu0
  %239 = vmatprep.mubr.bf16.mxu0 0
  %240 = vmatmul.mubr.bf16.gmra.mrb[0].mxu0 %v101
  %v241 = vpop.f32.mrb[0].mxu0
  %v242 = vadd.f32 %v61, %v241
  %v243 = vpop.f32.mrb[0].mxu0
  %v244 = vpop.f32.mrb[0].mxu0
  %v245 = vadd.f32 %v61, %v244
  %v246 = vpop.f32.mrb[0].mxu0
  %247 = vmatprep.mubr.bf16.mxu0 0
  %248 = vmatmul.mubr.bf16.gmra.mrb[0].mxu0 %v102
  %v249 = vpop.f32.mrb[0].mxu0
  %v250 = vadd.f32 %v61, %v249
  %v251 = vpop.f32.mrb[0].mxu0
  %v252 = vpop.f32.mrb[0].mxu0
  %v253 = vadd.f32 %v61, %v252
  %v254 = vpop.f32.mrb[0].mxu0
  %255 = vdwg.mxu0
  %256 = vst [vmem:[#allocation3] sm:$0xff] %v194
  %257 = vst [vmem:[#allocation3 + $0x8] sm:$0xff] %v197
  %258 = vst [vmem:[#allocation3 + $0x10] sm:$0xff] %v202
  %259 = vst [vmem:[#allocation3 + $0x18] sm:$0xff] %v205
  %260 = vst [vmem:[#allocation3 + $0x20] sm:$0xff] %v210
  %261 = vst [vmem:[#allocation3 + $0x28] sm:$0xff] %v213
  %262 = vst [vmem:[#allocation3 + $0x30] sm:$0xff] %v218
  %263 = vst [vmem:[#allocation3 + $0x38] sm:$0xff] %v221
  %264 = vst [vmem:[#allocation3 + $0x40] sm:$0xff] %v226
  %265 = vst [vmem:[#allocation3 + $0x48] sm:$0xff] %v229
  %266 = vst [vmem:[#allocation3 + $0x50] sm:$0xff] %v234
  %267 = vst [vmem:[#allocation3 + $0x58] sm:$0xff] %v237
  %268 = vst [vmem:[#allocation3 + $0x60] sm:$0xff] %v242
  %269 = vst [vmem:[#allocation3 + $0x68] sm:$0xff] %v245
  %270 = vst [vmem:[#allocation3 + $0x70] sm:$0xff] %v250
  %271 = vst [vmem:[#allocation3 + $0x78] sm:$0xff] %v253
  %v272 = vld [vmem:[%s2] sm:$0xf]
  %v273 = vld [vmem:[%s2 + $0x4] sm:$0xf]
  %v274 = vld [vmem:[%s2 + $0x8] sm:$0xf]
  %v275 = vld [vmem:[%s2 + $0xc] sm:$0xf]
  %v276 = vld [vmem:[%s2 + $0x10] sm:$0xf]
  %v277 = vld [vmem:[%s2 + $0x14] sm:$0xf]
  %v278 = vld [vmem:[%s2 + $0x18] sm:$0xf]
  %v279 = vld [vmem:[%s2 + $0x1c] sm:$0xf]
  %v280 = vld [vmem:[%s2 + $0x20] sm:$0xf]
  %v281 = vld [vmem:[%s2 + $0x24] sm:$0xf]
  %v282 = vld [vmem:[%s2 + $0x28] sm:$0xf]
  %v283 = vld [vmem:[%s2 + $0x2c] sm:$0xf]
  %v284 = vld [vmem:[%s2 + $0x30] sm:$0xf]
  %v285 = vld [vmem:[%s2 + $0x34] sm:$0xf]
  %v286 = vld [vmem:[%s2 + $0x38] sm:$0xf]
  %v287 = vld [vmem:[%s2 + $0x3c] sm:$0xf]
  %v288 = vld [vmem:[#allocation2] sm:$0xff]
  %v289 = vld [vmem:[#allocation2 + $0x8] sm:$0xff]
  %v290 = vld [vmem:[#allocation3] sm:$0xff]
  %v291 = vld [vmem:[#allocation3 + $0x8] sm:$0xff]
  %v292 = vpack.c.bf16 %v289, %v288
  %v309 = vunpack.c.l.b16 %v272
  %v310 = vunpack.c.l.b16 %v273
  %v311 = vunpack.c.l.b16 %v274
  %v312 = vunpack.c.l.b16 %v275
  %v313 = vunpack.c.l.b16 %v276
  %v314 = vunpack.c.l.b16 %v277
  %v315 = vunpack.c.l.b16 %v278
  %v316 = vunpack.c.l.b16 %v279
  %v317 = vunpack.c.l.b16 %v280
  %v318 = vunpack.c.l.b16 %v281
  %v319 = vunpack.c.l.b16 %v282
  %v320 = vunpack.c.l.b16 %v283
  %v321 = vunpack.c.l.b16 %v284
  %v322 = vunpack.c.l.b16 %v285
  %v323 = vunpack.c.l.b16 %v286
  %v324 = vunpack.c.l.b16 %v287
  %v325 = vpack.c.b16 %v310, %v309
  %v326 = vpack.c.b16 %v312, %v311
  %v327 = vpack.c.b16 %v314, %v313
  %v328 = vpack.c.b16 %v316, %v315
  %v329 = vpack.c.b16 %v318, %v317
  %v330 = vpack.c.b16 %v320, %v319
  %v331 = vpack.c.b16 %v322, %v321
  %v332 = vpack.c.b16 %v324, %v323
  %341 = vmatprep.subr.bf16.mxu0 0
  %342 = vmatpush1.bf16.msra.mxu0 %v325
  %343 = vmatprep.subr.bf16.mxu0 0
  %344 = vmatpush1.bf16.msra.mxu0 %v326
  %345 = vmatprep.subr.bf16.mxu0 0
  %346 = vmatpush1.bf16.msra.mxu0 %v327
  %347 = vmatprep.subr.bf16.mxu0 0
  %348 = vmatpush1.bf16.msra.mxu0 %v328
  %349 = vmatprep.subr.bf16.mxu0 0
  %350 = vmatpush1.bf16.msra.mxu0 %v329
  %351 = vmatprep.subr.bf16.mxu0 0
  %352 = vmatpush1.bf16.msra.mxu0 %v330
  %353 = vmatprep.subr.bf16.mxu0 0
  %354 = vmatpush1.bf16.msra.mxu0 %v331
  %355 = vmatprep.subr.bf16.mxu0 0
  %356 = vmatpush1.bf16.msra.mxu0 %v332
  %357 = vmatprep.subr.bf16.mxu0 0
  %358 = vmatpush1.bf16.msra.mxu0 0
  %359 = vmatprep.subr.bf16.mxu0 0
  %360 = vmatpush1.bf16.msra.mxu0 0
  %361 = vmatprep.subr.bf16.mxu0 0
  %362 = vmatpush1.bf16.msra.mxu0 0
  %363 = vmatprep.subr.bf16.mxu0 0
  %364 = vmatpush1.bf16.msra.mxu0 0
  %365 = vmatprep.subr.bf16.mxu0 0
  %366 = vmatpush1.bf16.msra.mxu0 0
  %367 = vmatprep.subr.bf16.mxu0 0
  %368 = vmatpush1.bf16.msra.mxu0 0
  %369 = vmatprep.subr.bf16.mxu0 0
  %370 = vmatpush1.bf16.msra.mxu0 0
  %371 = vmatprep.subr.bf16.mxu0 0
  %372 = vmatpush1.bf16.msra.mxu0 0
  %373 = vmatprep.mubr.bf16.mxu0 0
  %374 = vmatmul.mubr.bf16.gmra.mrb[0].mxu0 %v292
  %v375 = vpop.f32.mrb[0].mxu0
  %v376 = vadd.f32 0.0, %v375
  %v377 = vpop.f32.mrb[0].mxu0
  %v378 = vpop.f32.mrb[0].mxu0
  %v379 = vadd.f32 0.0, %v378
  %v380 = vpop.f32.mrb[0].mxu0
  %381 = vdwg.mxu0
  %v382 = vadd.f32 %v290, %v376
  %v383 = vadd.f32 %v291, %v379
  %v384 = vtanh.pop %v382
  %v385 = vtanh.pop %v383
  %s386 = smul.u32 0, 8
  %p387 = scmp.lt.s32.totalorder %s386, 3
  %s388 = scalar_select %p387, 1, 0
  %v389 = vstv %s388
  %vm390 = vcmp.eq.s32.totalorder %v389, 1
  %v391 = vsel %vm390, %v384, %v288
  %v392 = vsel %vm390, %v385, %v289
  %s393 = scalar_lea.vmem [#allocation3], 16
  %v394 = vld [vmem:[%s393] sm:$0xff]
  %v395 = vld [vmem:[%s393 + $0x8] sm:$0xff]
  %v396 = vpack.c.bf16 %v392, %v391
  %397 = vmatprep.subr.bf16.mxu0 0
  %398 = vmatpush1.bf16.msra.mxu0 %v325
  %399 = vmatprep.subr.bf16.mxu0 0
  %400 = vmatpush1.bf16.msra.mxu0 %v326
  %401 = vmatprep.subr.bf16.mxu0 0
  %402 = vmatpush1.bf16.msra.mxu0 %v327
  %403 = vmatprep.subr.bf16.mxu0 0
  %404 = vmatpush1.bf16.msra.mxu0 %v328
  %405 = vmatprep.subr.bf16.mxu0 0
  %406 = vmatpush1.bf16.msra.mxu0 %v329
  %407 = vmatprep.subr.bf16.mxu0 0
  %408 = vmatpush1.bf16.msra.mxu0 %v330
  %409 = vmatprep.subr.bf16.mxu0 0
  %410 = vmatpush1.bf16.msra.mxu0 %v331
  %411 = vmatprep.subr.bf16.mxu0 0
  %412 = vmatpush1.bf16.msra.mxu0 %v332
  %413 = vmatprep.subr.bf16.mxu0 0
  %414 = vmatpush1.bf16.msra.mxu0 0
  %415 = vmatprep.subr.bf16.mxu0 0
  %416 = vmatpush1.bf16.msra.mxu0 0
  %417 = vmatprep.subr.bf16.mxu0 0
  %418 = vmatpush1.bf16.msra.mxu0 0
  %419 = vmatprep.subr.bf16.mxu0 0
  %420 = vmatpush1.bf16.msra.mxu0 0
  %421 = vmatprep.subr.bf16.mxu0 0
  %422 = vmatpush1.bf16.msra.mxu0 0
  %423 = vmatprep.subr.bf16.mxu0 0
  %424 = vmatpush1.bf16.msra.mxu0 0
  %425 = vmatprep.subr.bf16.mxu0 0
  %426 = vmatpush1.bf16.msra.mxu0 0
  %427 = vmatprep.subr.bf16.mxu0 0
  %428 = vmatpush1.bf16.msra.mxu0 0
  %429 = vmatprep.mubr.bf16.mxu0 0
  %430 = vmatmul.mubr.bf16.gmra.mrb[0].mxu0 %v396
  %v431 = vpop.f32.mrb[0].mxu0
  %v432 = vadd.f32 0.0, %v431
  %v433 = vpop.f32.mrb[0].mxu0
  %v434 = vpop.f32.mrb[0].mxu0
  %v435 = vadd.f32 0.0, %v434
  %v436 = vpop.f32.mrb[0].mxu0
  %437 = vdwg.mxu0
  %v438 = vadd.f32 %v394, %v432
  %v439 = vadd.f32 %v395, %v435
  %v440 = vtanh.pop %v438
  %v441 = vtanh.pop %v439
  %s442 = sadd.s32 %s386, 1
  %p443 = scmp.lt.s32.totalorder %s442, 3
  %s444 = scalar_select %p443, 1, 0
  %v445 = vstv %s444
  %vm446 = vcmp.eq.s32.totalorder %v445, 1
  %v447 = vsel %vm446, %v440, %v391
  %v448 = vsel %vm446, %v441, %v392
  %s449 = scalar_lea.vmem [#allocation3], 32
  %v450 = vld [vmem:[%s449] sm:$0xff]
  %v451 = vld [vmem:[%s449 + $0x8] sm:$0xff]
  %v452 = vpack.c.bf16 %v448, %v447
  %453 = vmatprep.subr.bf16.mxu0 0
  %454 = vmatpush1.bf16.msra.mxu0 %v325
  %455 = vmatprep.subr.bf16.mxu0 0
  %456 = vmatpush1.bf16.msra.mxu0 %v326
  %457 = vmatprep.subr.bf16.mxu0 0
  %458 = vmatpush1.bf16.msra.mxu0 %v327
  %459 = vmatprep.subr.bf16.mxu0 0
  %460 = vmatpush1.bf16.msra.mxu0 %v328
  %461 = vmatprep.subr.bf16.mxu0 0
  %462 = vmatpush1.bf16.msra.mxu0 %v329
  %463 = vmatprep.subr.bf16.mxu0 0
  %464 = vmatpush1.bf16.msra.mxu0 %v330
  %465 = vmatprep.subr.bf16.mxu0 0
  %466 = vmatpush1.bf16.msra.mxu0 %v331
  %467 = vmatprep.subr.bf16.mxu0 0
  %468 = vmatpush1.bf16.msra.mxu0 %v332
  %469 = vmatprep.subr.bf16.mxu0 0
  %470 = vmatpush1.bf16.msra.mxu0 0
  %471 = vmatprep.subr.bf16.mxu0 0
  %472 = vmatpush1.bf16.msra.mxu0 0
  %473 = vmatprep.subr.bf16.mxu0 0
  %474 = vmatpush1.bf16.msra.mxu0 0
  %475 = vmatprep.subr.bf16.mxu0 0
  %476 = vmatpush1.bf16.msra.mxu0 0
  %477 = vmatprep.subr.bf16.mxu0 0
  %478 = vmatpush1.bf16.msra.mxu0 0
  %479 = vmatprep.subr.bf16.mxu0 0
  %480 = vmatpush1.bf16.msra.mxu0 0
  %481 = vmatprep.subr.bf16.mxu0 0
  %482 = vmatpush1.bf16.msra.mxu0 0
  %483 = vmatprep.subr.bf16.mxu0 0
  %484 = vmatpush1.bf16.msra.mxu0 0
  %485 = vmatprep.mubr.bf16.mxu0 0
  %486 = vmatmul.mubr.bf16.gmra.mrb[0].mxu0 %v452
  %v487 = vpop.f32.mrb[0].mxu0
  %v488 = vadd.f32 0.0, %v487
  %v489 = vpop.f32.mrb[0].mxu0
  %v490 = vpop.f32.mrb[0].mxu0
  %v491 = vadd.f32 0.0, %v490
  %v492 = vpop.f32.mrb[0].mxu0
  %493 = vdwg.mxu0
  %v494 = vadd.f32 %v450, %v488
  %v495 = vadd.f32 %v451, %v491
  %v496 = vtanh.pop %v494
  %v497 = vtanh.pop %v495
  %s498 = sadd.s32 %s386, 2
  %p499 = scmp.lt.s32.totalorder %s498, 3
  %s500 = scalar_select %p499, 1, 0
  %v501 = vstv %s500
  %vm502 = vcmp.eq.s32.totalorder %v501, 1
  %v503 = vsel %vm502, %v496, %v447
  %v504 = vsel %vm502, %v497, %v448
  %s505 = scalar_lea.vmem [#allocation3], 48
  %v506 = vld [vmem:[%s505] sm:$0xff]
  %v507 = vld [vmem:[%s505 + $0x8] sm:$0xff]
  %v508 = vpack.c.bf16 %v504, %v503
  %509 = vmatprep.subr.bf16.mxu0 0
  %510 = vmatpush1.bf16.msra.mxu0 %v325
  %511 = vmatprep.subr.bf16.mxu0 0
  %512 = vmatpush1.bf16.msra.mxu0 %v326
  %513 = vmatprep.subr.bf16.mxu0 0
  %514 = vmatpush1.bf16.msra.mxu0 %v327
  %515 = vmatprep.subr.bf16.mxu0 0
  %516 = vmatpush1.bf16.msra.mxu0 %v328
  %517 = vmatprep.subr.bf16.mxu0 0
  %518 = vmatpush1.bf16.msra.mxu0 %v329
  %519 = vmatprep.subr.bf16.mxu0 0
  %520 = vmatpush1.bf16.msra.mxu0 %v330
  %521 = vmatprep.subr.bf16.mxu0 0
  %522 = vmatpush1.bf16.msra.mxu0 %v331
  %523 = vmatprep.subr.bf16.mxu0 0
  %524 = vmatpush1.bf16.msra.mxu0 %v332
  %525 = vmatprep.subr.bf16.mxu0 0
  %526 = vmatpush1.bf16.msra.mxu0 0
  %527 = vmatprep.subr.bf16.mxu0 0
  %528 = vmatpush1.bf16.msra.mxu0 0
  %529 = vmatprep.subr.bf16.mxu0 0
  %530 = vmatpush1.bf16.msra.mxu0 0
  %531 = vmatprep.subr.bf16.mxu0 0
  %532 = vmatpush1.bf16.msra.mxu0 0
  %533 = vmatprep.subr.bf16.mxu0 0
  %534 = vmatpush1.bf16.msra.mxu0 0
  %535 = vmatprep.subr.bf16.mxu0 0
  %536 = vmatpush1.bf16.msra.mxu0 0
  %537 = vmatprep.subr.bf16.mxu0 0
  %538 = vmatpush1.bf16.msra.mxu0 0
  %539 = vmatprep.subr.bf16.mxu0 0
  %540 = vmatpush1.bf16.msra.mxu0 0
  %541 = vmatprep.mubr.bf16.mxu0 0
  %542 = vmatmul.mubr.bf16.gmra.mrb[0].mxu0 %v508
  %v543 = vpop.f32.mrb[0].mxu0
  %v544 = vadd.f32 0.0, %v543
  %v545 = vpop.f32.mrb[0].mxu0
  %v546 = vpop.f32.mrb[0].mxu0
  %v547 = vadd.f32 0.0, %v546
  %v548 = vpop.f32.mrb[0].mxu0
  %549 = vdwg.mxu0
  %v550 = vadd.f32 %v506, %v544
  %v551 = vadd.f32 %v507, %v547
  %v552 = vtanh.pop %v550
  %v553 = vtanh.pop %v551
  %s554 = sadd.s32 %s386, 3
  %p555 = scmp.lt.s32.totalorder %s554, 3
  %s556 = scalar_select %p555, 1, 0
  %v557 = vstv %s556
  %vm558 = vcmp.eq.s32.totalorder %v557, 1
  %v559 = vsel %vm558, %v552, %v503
  %v560 = vsel %vm558, %v553, %v504
  %s561 = scalar_lea.vmem [#allocation3], 64
  %v562 = vld [vmem:[%s561] sm:$0xff]
  %v563 = vld [vmem:[%s561 + $0x8] sm:$0xff]
  %v564 = vpack.c.bf16 %v560, %v559
  %565 = vmatprep.subr.bf16.mxu0 0
  %566 = vmatpush1.bf16.msra.mxu0 %v325
  %567 = vmatprep.subr.bf16.mxu0 0
  %568 = vmatpush1.bf16.msra.mxu0 %v326
  %569 = vmatprep.subr.bf16.mxu0 0
  %570 = vmatpush1.bf16.msra.mxu0 %v327
  %571 = vmatprep.subr.bf16.mxu0 0
  %572 = vmatpush1.bf16.msra.mxu0 %v328
  %573 = vmatprep.subr.bf16.mxu0 0
  %574 = vmatpush1.bf16.msra.mxu0 %v329
  %575 = vmatprep.subr.bf16.mxu0 0
  %576 = vmatpush1.bf16.msra.mxu0 %v330
  %577 = vmatprep.subr.bf16.mxu0 0
  %578 = vmatpush1.bf16.msra.mxu0 %v331
  %579 = vmatprep.subr.bf16.mxu0 0
  %580 = vmatpush1.bf16.msra.mxu0 %v332
  %581 = vmatprep.subr.bf16.mxu0 0
  %582 = vmatpush1.bf16.msra.mxu0 0
  %583 = vmatprep.subr.bf16.mxu0 0
  %584 = vmatpush1.bf16.msra.mxu0 0
  %585 = vmatprep.subr.bf16.mxu0 0
  %586 = vmatpush1.bf16.msra.mxu0 0
  %587 = vmatprep.subr.bf16.mxu0 0
  %588 = vmatpush1.bf16.msra.mxu0 0
  %589 = vmatprep.subr.bf16.mxu0 0
  %590 = vmatpush1.bf16.msra.mxu0 0
  %591 = vmatprep.subr.bf16.mxu0 0
  %592 = vmatpush1.bf16.msra.mxu0 0
  %593 = vmatprep.subr.bf16.mxu0 0
  %594 = vmatpush1.bf16.msra.mxu0 0
  %595 = vmatprep.subr.bf16.mxu0 0
  %596 = vmatpush1.bf16.msra.mxu0 0
  %597 = vmatprep.mubr.bf16.mxu0 0
  %598 = vmatmul.mubr.bf16.gmra.mrb[0].mxu0 %v564
  %v599 = vpop.f32.mrb[0].mxu0
  %v600 = vadd.f32 0.0, %v599
  %v601 = vpop.f32.mrb[0].mxu0
  %v602 = vpop.f32.mrb[0].mxu0
  %v603 = vadd.f32 0.0, %v602
  %v604 = vpop.f32.mrb[0].mxu0
  %605 = vdwg.mxu0
  %v606 = vadd.f32 %v562, %v600
  %v607 = vadd.f32 %v563, %v603
  %v608 = vtanh.pop %v606
  %v609 = vtanh.pop %v607
  %s610 = sadd.s32 %s386, 4
  %p611 = scmp.lt.s32.totalorder %s610, 3
  %s612 = scalar_select %p611, 1, 0
  %v613 = vstv %s612
  %vm614 = vcmp.eq.s32.totalorder %v613, 1
  %v615 = vsel %vm614, %v608, %v559
  %v616 = vsel %vm614, %v609, %v560
  %s617 = scalar_lea.vmem [#allocation3], 80
  %v618 = vld [vmem:[%s617] sm:$0xff]
  %v619 = vld [vmem:[%s617 + $0x8] sm:$0xff]
  %v620 = vpack.c.bf16 %v616, %v615
  %621 = vmatprep.subr.bf16.mxu0 0
  %622 = vmatpush1.bf16.msra.mxu0 %v325
  %623 = vmatprep.subr.bf16.mxu0 0
  %624 = vmatpush1.bf16.msra.mxu0 %v326
  %625 = vmatprep.subr.bf16.mxu0 0
  %626 = vmatpush1.bf16.msra.mxu0 %v327
  %627 = vmatprep.subr.bf16.mxu0 0
  %628 = vmatpush1.bf16.msra.mxu0 %v328
  %629 = vmatprep.subr.bf16.mxu0 0
  %630 = vmatpush1.bf16.msra.mxu0 %v329
  %631 = vmatprep.subr.bf16.mxu0 0
  %632 = vmatpush1.bf16.msra.mxu0 %v330
  %633 = vmatprep.subr.bf16.mxu0 0
  %634 = vmatpush1.bf16.msra.mxu0 %v331
  %635 = vmatprep.subr.bf16.mxu0 0
  %636 = vmatpush1.bf16.msra.mxu0 %v332
  %637 = vmatprep.subr.bf16.mxu0 0
  %638 = vmatpush1.bf16.msra.mxu0 0
  %639 = vmatprep.subr.bf16.mxu0 0
  %640 = vmatpush1.bf16.msra.mxu0 0
  %641 = vmatprep.subr.bf16.mxu0 0
  %642 = vmatpush1.bf16.msra.mxu0 0
  %643 = vmatprep.subr.bf16.mxu0 0
  %644 = vmatpush1.bf16.msra.mxu0 0
  %645 = vmatprep.subr.bf16.mxu0 0
  %646 = vmatpush1.bf16.msra.mxu0 0
  %647 = vmatprep.subr.bf16.mxu0 0
  %648 = vmatpush1.bf16.msra.mxu0 0
  %649 = vmatprep.subr.bf16.mxu0 0
  %650 = vmatpush1.bf16.msra.mxu0 0
  %651 = vmatprep.subr.bf16.mxu0 0
  %652 = vmatpush1.bf16.msra.mxu0 0
  %653 = vmatprep.mubr.bf16.mxu0 0
  %654 = vmatmul.mubr.bf16.gmra.mrb[0].mxu0 %v620
  %v655 = vpop.f32.mrb[0].mxu0
  %v656 = vadd.f32 0.0, %v655
  %v657 = vpop.f32.mrb[0].mxu0
  %v658 = vpop.f32.mrb[0].mxu0
  %v659 = vadd.f32 0.0, %v658
  %v660 = vpop.f32.mrb[0].mxu0
  %661 = vdwg.mxu0
  %v662 = vadd.f32 %v618, %v656
  %v663 = vadd.f32 %v619, %v659
  %v664 = vtanh.pop %v662
  %v665 = vtanh.pop %v663
  %s666 = sadd.s32 %s386, 5
  %p667 = scmp.lt.s32.totalorder %s666, 3
  %s668 = scalar_select %p667, 1, 0
  %v669 = vstv %s668
  %vm670 = vcmp.eq.s32.totalorder %v669, 1
  %v671 = vsel %vm670, %v664, %v615
  %v672 = vsel %vm670, %v665, %v616
  %s673 = scalar_lea.vmem [#allocation3], 96
  %v674 = vld [vmem:[%s673] sm:$0xff]
  %v675 = vld [vmem:[%s673 + $0x8] sm:$0xff]
  %v676 = vpack.c.bf16 %v672, %v671
  %677 = vmatprep.subr.bf16.mxu0 0
  %678 = vmatpush1.bf16.msra.mxu0 %v325
  %679 = vmatprep.subr.bf16.mxu0 0
  %680 = vmatpush1.bf16.msra.mxu0 %v326
  %681 = vmatprep.subr.bf16.mxu0 0
  %682 = vmatpush1.bf16.msra.mxu0 %v327
  %683 = vmatprep.subr.bf16.mxu0 0
  %684 = vmatpush1.bf16.msra.mxu0 %v328
  %685 = vmatprep.subr.bf16.mxu0 0
  %686 = vmatpush1.bf16.msra.mxu0 %v329
  %687 = vmatprep.subr.bf16.mxu0 0
  %688 = vmatpush1.bf16.msra.mxu0 %v330
  %689 = vmatprep.subr.bf16.mxu0 0
  %690 = vmatpush1.bf16.msra.mxu0 %v331
  %691 = vmatprep.subr.bf16.mxu0 0
  %692 = vmatpush1.bf16.msra.mxu0 %v332
  %693 = vmatprep.subr.bf16.mxu0 0
  %694 = vmatpush1.bf16.msra.mxu0 0
  %695 = vmatprep.subr.bf16.mxu0 0
  %696 = vmatpush1.bf16.msra.mxu0 0
  %697 = vmatprep.subr.bf16.mxu0 0
  %698 = vmatpush1.bf16.msra.mxu0 0
  %699 = vmatprep.subr.bf16.mxu0 0
  %700 = vmatpush1.bf16.msra.mxu0 0
  %701 = vmatprep.subr.bf16.mxu0 0
  %702 = vmatpush1.bf16.msra.mxu0 0
  %703 = vmatprep.subr.bf16.mxu0 0
  %704 = vmatpush1.bf16.msra.mxu0 0
  %705 = vmatprep.subr.bf16.mxu0 0
  %706 = vmatpush1.bf16.msra.mxu0 0
  %707 = vmatprep.subr.bf16.mxu0 0
  %708 = vmatpush1.bf16.msra.mxu0 0
  %709 = vmatprep.mubr.bf16.mxu0 0
  %710 = vmatmul.mubr.bf16.gmra.mrb[0].mxu0 %v676
  %v711 = vpop.f32.mrb[0].mxu0
  %v712 = vadd.f32 0.0, %v711
  %v713 = vpop.f32.mrb[0].mxu0
  %v714 = vpop.f32.mrb[0].mxu0
  %v715 = vadd.f32 0.0, %v714
  %v716 = vpop.f32.mrb[0].mxu0
  %717 = vdwg.mxu0
  %v718 = vadd.f32 %v674, %v712
  %v719 = vadd.f32 %v675, %v715
  %v720 = vtanh.pop %v718
  %v721 = vtanh.pop %v719
  %s722 = sadd.s32 %s386, 6
  %p723 = scmp.lt.s32.totalorder %s722, 3
  %s724 = scalar_select %p723, 1, 0
  %v725 = vstv %s724
  %vm726 = vcmp.eq.s32.totalorder %v725, 1
  %v727 = vsel %vm726, %v720, %v671
  %v728 = vsel %vm726, %v721, %v672
  %s729 = scalar_lea.vmem [#allocation3], 112
  %v730 = vld [vmem:[%s729] sm:$0xff]
  %v731 = vld [vmem:[%s729 + $0x8] sm:$0xff]
  %v732 = vpack.c.bf16 %v728, %v727
  %733 = vmatprep.subr.bf16.mxu0 0
  %734 = vmatpush1.bf16.msra.mxu0 %v325
  %735 = vmatprep.subr.bf16.mxu0 0
  %736 = vmatpush1.bf16.msra.mxu0 %v326
  %737 = vmatprep.subr.bf16.mxu0 0
  %738 = vmatpush1.bf16.msra.mxu0 %v327
  %739 = vmatprep.subr.bf16.mxu0 0
  %740 = vmatpush1.bf16.msra.mxu0 %v328
  %741 = vmatprep.subr.bf16.mxu0 0
  %742 = vmatpush1.bf16.msra.mxu0 %v329
  %743 = vmatprep.subr.bf16.mxu0 0
  %744 = vmatpush1.bf16.msra.mxu0 %v330
  %745 = vmatprep.subr.bf16.mxu0 0
  %746 = vmatpush1.bf16.msra.mxu0 %v331
  %747 = vmatprep.subr.bf16.mxu0 0
  %748 = vmatpush1.bf16.msra.mxu0 %v332
  %749 = vmatprep.subr.bf16.mxu0 0
  %750 = vmatpush1.bf16.msra.mxu0 0
  %751 = vmatprep.subr.bf16.mxu0 0
  %752 = vmatpush1.bf16.msra.mxu0 0
  %753 = vmatprep.subr.bf16.mxu0 0
  %754 = vmatpush1.bf16.msra.mxu0 0
  %755 = vmatprep.subr.bf16.mxu0 0
  %756 = vmatpush1.bf16.msra.mxu0 0
  %757 = vmatprep.subr.bf16.mxu0 0
  %758 = vmatpush1.bf16.msra.mxu0 0
  %759 = vmatprep.subr.bf16.mxu0 0
  %760 = vmatpush1.bf16.msra.mxu0 0
  %761 = vmatprep.subr.bf16.mxu0 0
  %762 = vmatpush1.bf16.msra.mxu0 0
  %763 = vmatprep.subr.bf16.mxu0 0
  %764 = vmatpush1.bf16.msra.mxu0 0
  %765 = vmatprep.mubr.bf16.mxu0 0
  %766 = vmatmul.mubr.bf16.gmra.mrb[0].mxu0 %v732
  %v767 = vpop.f32.mrb[0].mxu0
  %v768 = vadd.f32 0.0, %v767
  %v769 = vpop.f32.mrb[0].mxu0
  %v770 = vpop.f32.mrb[0].mxu0
  %v771 = vadd.f32 0.0, %v770
  %v772 = vpop.f32.mrb[0].mxu0
  %773 = vdwg.mxu0
  %v774 = vadd.f32 %v730, %v768
  %v775 = vadd.f32 %v731, %v771
  %v776 = vtanh.pop %v774
  %v777 = vtanh.pop %v775
  %s778 = sadd.s32 %s386, 7
  %p779 = scmp.lt.s32.totalorder %s778, 3
  %s780 = scalar_select %p779, 1, 0
  %v781 = vstv %s780
  %vm782 = vcmp.eq.s32.totalorder %v781, 1
  %v783 = vsel %vm782, %v776, %v727
  %v784 = vsel %vm782, %v777, %v728
  %785 = vst [vmem:[#allocation2] sm:$0xff] %v783
  %786 = vst [vmem:[#allocation2 + $0x8] sm:$0xff] %v784
  // Predicated region
  $region22: #{rnn_language_model_forward.3} parent=0 // pred_check
    %p787 = pneg %p18
  $region23: #{rnn_language_model_forward.3} parent=0 // pred_check_branch
    %789 = sbr.rel (%p787) target = $region25
  $region24: #{rnn_language_model_forward.3} parent=0 // pred_region
    %790 = vst [vmem:[%s4] sm:$0xff] %v783
    %791 = vst [vmem:[%s4 + $0x8] sm:$0xff] %v784
  $region25: #{rnn_language_model_forward.3} parent=0 // pred_fallthru
    _
  // Predicated region
  $region26: #{rnn_language_model_forward.3} parent=0 // pred_check
    _
  $region27: #{rnn_language_model_forward.3} parent=0 // pred_check_branch
    %793 = sbr.rel (0) target = $region29
  $region28: #{rnn_language_model_forward.3} parent=0 // pred_region
    _
  $region29: #{rnn_language_model_forward.3} parent=0 // pred_fallthru
    _
  // Predicated region
  $region30: #{rnn_language_model_forward.3} parent=0 // pred_check
    _
  $region31: #{rnn_language_model_forward.3} parent=0 // pred_check_branch
    %795 = sbr.rel (0) target = $region33
  $region32: #{rnn_language_model_forward.3} parent=0 // pred_region
    _
  $region33: #{rnn_language_model_forward.3} parent=0 // pred_fallthru
    _

</llo_original>
